<compile_context>
chip_gen: v7x
topology: tpu7x:2x2x1
jax: 0.10.0
libtpu: 0.0.40
codegen_flags: <defaults>
</compile_context>

<pallas_src>
import functools

import jax
import jax.numpy as jnp
from jax.experimental import pallas as pl
from jax.experimental.pallas import tpu as pltpu

# ----- DeepCAD constants (cadlib/macro.py) -----------------------------------
EOS_IDX = 3
N_ARGS_SKETCH = 5
N_ARGS_EXT = 11
N_ARGS = N_ARGS_SKETCH + N_ARGS_EXT  # 16

CMD_ARGS_MASK = jnp.array(
    [
        [1, 1, 0, 0, 0] + [0] * N_ARGS_EXT,     # Line
        [1, 1, 1, 1, 0] + [0] * N_ARGS_EXT,     # Arc
        [1, 1, 0, 0, 1] + [0] * N_ARGS_EXT,     # Circle
        [0] * N_ARGS,                           # EOS
        [0] * N_ARGS,                           # SOL
        [0] * N_ARGS_SKETCH + [1] * N_ARGS_EXT  # Extrude
    ],
    dtype=jnp.float32,
)


# ----- Pallas kernel: per-block masked cross-entropy partial sum --------------
def _masked_ce_block_kernel(logits_ref, tgt_ref, out_ref, *, num_rows):
    """Writes sum over the tile of CE(row) for rows with tgt >= 0 and row < num_rows."""
    i = pl.program_id(0)
    tm = logits_ref.shape[0]

    x = logits_ref[...]                            # [TM, C], native dtype (bf16 ok)
    tgt = tgt_ref[...]                             # [TM, 1], int32, -1 == not selected

    # Numerically stable log-sum-exp.  The row max is a pure selection, so it is
    # exact in the native dtype; the f32 upcast then feeds a single consumer
    # chain (sub -> exp -> sum) and does not need a second materialised tile.
    row_max = jnp.max(x, axis=-1, keepdims=True).astype(jnp.float32)
    sumexp = jnp.sum(jnp.exp(x.astype(jnp.float32) - row_max),
                     axis=-1, keepdims=True)
    lse = jnp.log(sumexp) + row_max                # [TM, 1] f32

    # One-hot gather of the target logit (no data-dependent gather on TPU).
    # Done in the native dtype: exactly one non-zero per row, so the sum is
    # exact; only the reduced [TM, 1] column is upcast.
    cls = jax.lax.broadcasted_iota(jnp.int32, x.shape, 1)
    tgt_logit = jnp.sum(jnp.where(cls == tgt, x, jnp.zeros_like(x)),
                        axis=-1, keepdims=True).astype(jnp.float32)

    # Row validity: masked-out rows (tgt < 0) and OOB tail rows of the last
    # (partial) block.  Must be a select, not a multiply: garbage tail rows may
    # contain Inf/NaN and the select has to happen BEFORE the cross-row sum.
    row_ids = i * tm + jax.lax.broadcasted_iota(jnp.int32, (tm, 1), 0)
    sel = (tgt >= 0) & (row_ids < num_rows)

    block_sum = jnp.sum(jnp.where(sel, lse - tgt_logit, 0.0))   # f32 scalar
    # Lane-dense (1, 8, 128) output block: one unmasked vst per grid step.
    out_ref[...] = jnp.full(out_ref.shape, block_sum, dtype=jnp.float32)


def _choose_tile(M, tm):
    """Pick a sublane-friendly row tile; best-effort even grid for v7x megacore."""
    if M <= tm:
        return M, 1                              # single full-array block (always legal)
    tm_eff = max(16, (tm // 16) * 16)            # 16-row multiple: bf16 & f32 friendly
    grid = pl.cdiv(M, tm_eff)
    if grid % 2 == 1:                            # try to split evenly across 2 TCs
        tm_alt = max(16, ((pl.cdiv(M, grid + 1) + 15) // 16) * 16)
        grid_alt = pl.cdiv(M, tm_alt)
        if grid_alt % 2 == 0 and tm_alt <= tm_eff:
            tm_eff, grid = tm_alt, grid_alt
    return tm_eff, grid


def masked_cross_entropy_sum(logits, folded_targets, *, tm=4096,
                             vmem_limit_bytes=48 * 1024 * 1024):
    """sum_{rows with folded_targets >= 0} CE(logits_row, target_row).

    logits: [M, C] (any float dtype, consumed in-place -- no wrapper pad/cast),
    folded_targets: [M] int (-1 == masked out).
    Note: a selected target >= C is bad input (silently contributes lse only),
    matching the previous behaviour; callers here construct in-range targets.
    """
    M, C = logits.shape
    tm_eff, grid = _choose_tile(M, tm)

    tgt2d = folded_targets.astype(jnp.int32).reshape(M, 1)
    kernel = functools.partial(_masked_ce_block_kernel, num_rows=M)

    itemsize = jnp.dtype(logits.dtype).itemsize
    cost = pl.CostEstimate(
        flops=int(5 * M * C),
        transcendentals=int(M * (C + 1)),
        bytes_accessed=int(M * C * itemsize + M * 4 + grid * 8 * 128 * 4),
    )

    partials = pl.pallas_call(
        kernel,
        out_shape=jax.ShapeDtypeStruct((grid, 8, 128), jnp.float32),
        grid_spec=pltpu.PrefetchScalarGridSpec(
            num_scalar_prefetch=0,
            grid=(grid,),
            in_specs=[
                pl.BlockSpec((tm_eff, C), lambda i: (i, 0)),
                pl.BlockSpec((tm_eff, 1), lambda i: (i, 0)),
            ],
            out_specs=pl.BlockSpec((1, 8, 128), lambda i: (i, 0, 0)),
        ),
        compiler_params=pltpu.CompilerParams(
            dimension_semantics=("parallel",),
            vmem_limit_bytes=int(vmem_limit_bytes),
        ),
        cost_estimate=cost,
    )(logits, tgt2d)

    return jnp.sum(partials[:, 0, 0])


# ----- mask helpers (plain-JAX glue, mirrors DeepCAD model_utils) -------------
def _get_visibility_mask(commands):
    # commands: [N, S]; a sample is visible unless it is (almost) all EOS
    S = commands.shape[-1]
    return jnp.sum((commands == EOS_IDX).astype(jnp.int32), axis=-1) < S - 1


def _get_padding_mask_extended(commands):
    # positions strictly before the first EOS ...
    pad = (jnp.cumsum((commands == EOS_IDX).astype(jnp.int32), axis=-1) == 0)
    pad = pad.astype(jnp.float32)
    # ... extended by one position so the first EOS is included in the loss
    shifted = jnp.concatenate([jnp.zeros_like(pad[..., :1]), pad[..., :-1]], axis=-1)
    return jnp.minimum(pad + shifted, 1.0)


# ----- CADLoss forward --------------------------------------------------------
class CADLossPallas:
    def __init__(self, n_commands, args_dim, loss_weights, *, tm_args=4096):
        self.n_commands = n_commands
        self.args_dim = args_dim + 1  # +1 for the shifted PAD class
        self.weights = loss_weights
        self.cmd_args_mask = CMD_ARGS_MASK  # [n_commands, N_ARGS]
        self.tm_args = tm_args

    def __call__(self, output):
        tgt_commands = output["tgt_commands"].astype(jnp.int32)   # [N, S]
        tgt_args = output["tgt_args"].astype(jnp.int32)           # [N, S, N_ARGS]
        command_logits = output["command_logits"]                 # [N, S, n_commands]
        args_logits = output["args_logits"]                       # [N, S, N_ARGS, args_dim]

        visibility_mask = _get_visibility_mask(tgt_commands)                      # [N] bool
        padding_mask = (_get_padding_mask_extended(tgt_commands)
                        * visibility_mask[:, None].astype(jnp.float32))           # [N, S]

        # per-(position, arg-slot) mask from the command type
        mask = jnp.take(self.cmd_args_mask, tgt_commands, axis=0)                 # [N, S, N_ARGS]

        # ---- loss_cmd: plain JAX. C = n_commands = 6 -> a Pallas kernel here is
        # 6/128 lane-utilised and <1 MB of HBM traffic; launch overhead dominates.
        cmd_logits = command_logits.reshape(-1, self.n_commands).astype(jnp.float32)
        cmd_tgt = tgt_commands.reshape(-1)
        cmd_sel = padding_mask.reshape(-1) > 0
        logp = jax.nn.log_softmax(cmd_logits, axis=-1)
        cmd_nll = -jnp.take_along_axis(logp, cmd_tgt[:, None], axis=-1)[:, 0]
        loss_cmd = jnp.sum(jnp.where(cmd_sel, cmd_nll, 0.0)) / jnp.sum(padding_mask)

        # ---- loss_args: Pallas masked CE over args_dim(+1) bins, averaged over
        # active arg slots.  Masks folded into the target stream (-1 == skip).
        args_tgt = jnp.where(mask > 0, tgt_args + 1, -1).reshape(-1)              # +1: PAD_VAL shift
        args_sum = masked_cross_entropy_sum(
            args_logits.reshape(-1, self.args_dim), args_tgt, tm=self.tm_args)
        loss_args = args_sum / jnp.sum(mask)

        return {
            "loss_cmd": self.weights["loss_cmd_weight"] * loss_cmd,
            "loss_args": self.weights["loss_args_weight"] * loss_args,
        }


# ----- pure-JAX reference (for the in-script correctness check) ---------------
def _ref_masked_ce_mean(logits, targets, mask):
    logits = logits.astype(jnp.float32)
    lse = jax.nn.logsumexp(logits, axis=-1)
    t = jnp.clip(targets.astype(jnp.int32), 0, logits.shape[-1] - 1)
    tl = jnp.take_along_axis(logits, t[:, None], axis=-1)[:, 0]
    m = mask.astype(jnp.float32)
    return jnp.sum((lse - tl) * m) / jnp.sum(m)


# ----- demo -------------------------------------------------------------------
if __name__ == "__main__":
    N, S = 2, 8
    n_commands = 6
    args_dim = 256  # module uses args_dim + 1 = 257 classes

    key = jax.random.PRNGKey(0)
    k1, k2, k3, k4, k5, k6, k7, k8 = jax.random.split(key, 8)

    # deterministic, structured command sequences (SOL, sketch cmds, Ext, EOS pad)
    tgt_commands = jnp.array(
        [[4, 0, 1, 2, 5, 3, 3, 3],
         [4, 0, 0, 2, 5, 3, 3, 3]], dtype=jnp.int32)                    # [N, S]
    tgt_args = jax.random.randint(k1, (N, S, N_ARGS), -1, args_dim)      # [-1, 255]
    command_logits = jax.random.normal(k2, (N, S, n_commands), jnp.float32)
    # args logits in bf16 to exercise the native-dtype (no wrapper cast) path
    args_logits = jax.random.normal(
        k3, (N, S, N_ARGS, args_dim + 1), jnp.float32).astype(jnp.bfloat16)

    output = {
        "tgt_commands": tgt_commands,
        "tgt_args": tgt_args,
        "command_logits": command_logits,
        "args_logits": args_logits,
    }

    loss_fn = CADLossPallas(
        n_commands=n_commands,
        args_dim=args_dim,
        loss_weights={"loss_cmd_weight": 1.0, "loss_args_weight": 2.0},
    )

    res = loss_fn(output)
    res = jax.tree_util.tree_map(jax.block_until_ready, res)
    assert jnp.isfinite(res["loss_cmd"]) and jnp.isfinite(res["loss_args"])

    # pure-JAX reference of the full forward
    vis = _get_visibility_mask(tgt_commands)
    pad_mask = _get_padding_mask_extended(tgt_commands) * vis[:, None].astype(jnp.float32)
    args_mask = jnp.take(CMD_ARGS_MASK, tgt_commands, axis=0)
    ref_cmd = 1.0 * _ref_masked_ce_mean(
        command_logits.reshape(-1, n_commands), tgt_commands.reshape(-1), pad_mask.reshape(-1))
    ref_args = 2.0 * _ref_masked_ce_mean(
        args_logits.reshape(-1, args_dim + 1), tgt_args.reshape(-1) + 1, args_mask.reshape(-1))
    assert jnp.allclose(res["loss_cmd"], ref_cmd, rtol=2e-3, atol=2e-3)
    assert jnp.allclose(res["loss_args"], ref_args, rtol=2e-3, atol=2e-3)

    # extra check 1: multi-step grid (odd, non-divisible tail block), f32 logits
    Mx, Cx = 100, 37
    lg = jax.random.normal(k4, (Mx, Cx), jnp.float32)
    tg = jax.random.randint(k5, (Mx,), 0, Cx)
    mk = (jax.random.uniform(k6, (Mx,)) > 0.3).astype(jnp.float32)
    folded = jnp.where(mk > 0, tg, -1)
    got = jax.block_until_ready(masked_cross_entropy_sum(lg, folded, tm=16) / jnp.sum(mk))
    want = _ref_masked_ce_mean(lg, tg, mk)
    assert jnp.allclose(got, want, rtol=1e-4, atol=1e-4)

    # extra check 2: multi-step even grid, bf16 logits, 257 classes, partial tail
    Mb, Cb = 200, 257
    lgb = jax.random.normal(k7, (Mb, Cb), jnp.float32).astype(jnp.bfloat16)
    tgb = jax.random.randint(k8, (Mb,), 0, Cb)
    mkb = (jax.random.uniform(k6, (Mb,)) > 0.4).astype(jnp.float32)
    foldedb = jnp.where(mkb > 0, tgb, -1)
    gotb = jax.block_until_ready(masked_cross_entropy_sum(lgb, foldedb, tm=64) / jnp.sum(mkb))
    wantb = _ref_masked_ce_mean(lgb, tgb, mkb)
    assert jnp.allclose(gotb, wantb, rtol=2e-3, atol=2e-3)

    print("KERNEL_OK")
</pallas_src>

<mosaic_0001>
module attributes {stable_mosaic.version = 11 : i64} {
  func.func @_masked_ce_block_kernel(%arg0: i32, %arg1: memref<256x257xbf16, #tpu.memory_space<vmem>>, %arg2: memref<256x1xi32, #tpu.memory_space<vmem>>, %arg3: memref<1x8x128xf32, #tpu.memory_space<vmem>>) attributes {dimension_semantics = [#tpu.dimension_semantics<parallel>], iteration_bounds = array<i64: 1>, scalar_prefetch = 0 : i64, scratch_operands = 0 : i64, tpu.core_type = #tpu.core_type<tc>, window_params = [{transform_indices = @transform_0, window_bounds = array<i64: 256, 257>}, {transform_indices = @transform_1, window_bounds = array<i64: 256, 1>}, {transform_indices = @transform_2, window_bounds = array<i64: 1, 8, 128>}]} {
    %c0 = arith.constant 0 : index
    %c0_0 = arith.constant 0 : index
    %0 = vector.load %arg1[%c0, %c0_0] : memref<256x257xbf16, #tpu.memory_space<vmem>>, vector<256x257xbf16>
    %c0_1 = arith.constant 0 : index
    %c0_2 = arith.constant 0 : index
    %1 = vector.load %arg2[%c0_1, %c0_2] : memref<256x1xi32, #tpu.memory_space<vmem>>, vector<256x1xi32>
    %cst = arith.constant dense<0xFF80> : vector<256xbf16>
    %2 = vector.multi_reduction <maximumf>, %0, %cst [1] : vector<256x257xbf16> to vector<256xbf16>
    %3 = vector.shape_cast %2 : vector<256xbf16> to vector<256x1xbf16>
    %4 = arith.extf %3 : vector<256x1xbf16> to vector<256x1xf32>
    %5 = arith.extf %0 : vector<256x257xbf16> to vector<256x257xf32>
    %6 = vector.broadcast %4 : vector<256x1xf32> to vector<256x257xf32>
    %7 = arith.subf %5, %6 : vector<256x257xf32>
    %8 = math.exp %7 : vector<256x257xf32>
    %cst_3 = arith.constant dense<0.000000e+00> : vector<256xf32>
    %9 = vector.multi_reduction <add>, %8, %cst_3 [1] : vector<256x257xf32> to vector<256xf32>
    %10 = vector.shape_cast %9 : vector<256xf32> to vector<256x1xf32>
    %11 = math.log %10 : vector<256x1xf32>
    %12 = arith.addf %11, %4 : vector<256x1xf32>
    %13 = tpu.iota {dimensions = array<i32: 1>} : vector<256x257xi32>
    %14 = vector.broadcast %1 : vector<256x1xi32> to vector<256x257xi32>
    %15 = arith.cmpi eq, %13, %14 : vector<256x257xi32>
    %cst_4 = arith.constant 0.000000e+00 : bf16
    %16 = vector.broadcast %cst_4 : bf16 to vector<256x257xbf16>
    %17 = arith.select %15, %0, %16 : vector<256x257xi1>, vector<256x257xbf16>
    %18 = arith.extf %17 : vector<256x257xbf16> to vector<256x257xf32>
    %cst_5 = arith.constant dense<0.000000e+00> : vector<256xf32>
    %19 = vector.multi_reduction <add>, %18, %cst_5 [1] : vector<256x257xf32> to vector<256xf32>
    %20 = vector.shape_cast %19 : vector<256xf32> to vector<256x1xf32>
    %21 = arith.truncf %20 : vector<256x1xf32> to vector<256x1xbf16>
    %22 = arith.extf %21 : vector<256x1xbf16> to vector<256x1xf32>
    %c256_i32 = arith.constant 256 : i32
    %23 = arith.muli %arg0, %c256_i32 : i32
    %24 = tpu.iota {dimensions = array<i32: 0>} : vector<256x1xi32>
    %25 = vector.broadcast %23 : i32 to vector<256x1xi32>
    %26 = arith.addi %25, %24 : vector<256x1xi32>
    %c0_i32 = arith.constant 0 : i32
    %27 = vector.broadcast %c0_i32 : i32 to vector<256x1xi32>
    %28 = arith.cmpi sge, %1, %27 : vector<256x1xi32>
    %c256_i32_6 = arith.constant 256 : i32
    %29 = vector.broadcast %c256_i32_6 : i32 to vector<256x1xi32>
    %30 = arith.cmpi slt, %26, %29 : vector<256x1xi32>
    %31 = arith.andi %28, %30 : vector<256x1xi1>
    %32 = arith.subf %12, %22 : vector<256x1xf32>
    %cst_7 = arith.constant 0.000000e+00 : f32
    %33 = vector.broadcast %cst_7 : f32 to vector<256x1xf32>
    %34 = arith.select %31, %32, %33 : vector<256x1xi1>, vector<256x1xf32>
    %35 = vector.shape_cast %34 : vector<256x1xf32> to vector<1x256x1xf32>
    %cst_8 = arith.constant dense<0.000000e+00> : vector<1xf32>
    %36 = vector.multi_reduction <add>, %35, %cst_8 [1, 2] : vector<1x256x1xf32> to vector<1xf32>
    %37 = vector.shape_cast %36 : vector<1xf32> to vector<1x1x1xf32>
    %38 = vector.extract %37[0, 0, 0] : f32 from vector<1x1x1xf32>
    %39 = vector.broadcast %38 : f32 to vector<1x8x128xf32>
    %c0_9 = arith.constant 0 : index
    %c0_10 = arith.constant 0 : index
    %c0_11 = arith.constant 0 : index
    %40 = vector.load %arg3[%c0_9, %c0_10, %c0_11] : memref<1x8x128xf32, #tpu.memory_space<vmem>>, vector<1x8x128xf32>
    tpu.vector_store %arg3[%c0_9, %c0_10, %c0_11], %39 {strides = array<i32>} : memref<1x8x128xf32, #tpu.memory_space<vmem>>, vector<1x8x128xf32>,
    return
  }
  func.func @transform_0(%arg0: i32) -> (i32, i32) {
    %c0_i32 = arith.constant 0 : i32
    %c0_i32_0 = arith.constant 0 : i32
    return %arg0, %c0_i32 : i32, i32
  }
  func.func @transform_1(%arg0: i32) -> (i32, i32) {
    %c0_i32 = arith.constant 0 : i32
    %c0_i32_0 = arith.constant 0 : i32
    return %arg0, %c0_i32 : i32, i32
  }
  func.func @transform_2(%arg0: i32) -> (i32, i32, i32) {
    %c0_i32 = arith.constant 0 : i32
    %c0_i32_0 = arith.constant 0 : i32
    %c0_i32_1 = arith.constant 0 : i32
    return %arg0, %c0_i32, %c0_i32_0 : i32, i32, i32
  }
}

</mosaic_0001>

<llo_original>
// kernel: tpu_custom_call.1
$region0: #{tpu_custom_call.1}
  #allocation0 [shape = 'u32[]', space=smem, size = 0x4, offset = 0x4, fixed_abs, tag = 'smem constant byte address 0x4 - core index']
  #allocation1 [shape = 'u32[144,128]{1,0:T(1,128)}', space=vmem, size = 0x12000, scoped, tag = 'internal scratch']
  %s0 = inlined_call_operand.vmem [shape: bf16[256,257], index: 0, kind: input, shape index: {}]
  %s1 = inlined_call_operand.vmem [shape: s32[256,1], index: 1, kind: input, shape index: {}]
  %s2 = inlined_call_operand.hbm [shape: f32[1,8,128], index: 2, kind: output, shape index: {}]
  %s3 = sld [smem:[#allocation0]]
  $region18: #{tpu_custom_call.1} parent=0
    _
  %s5 = ssub.s32 1, %s3
  %s6 = scalar_select 0, %s5, %s3
  $region1: #{tpu_custom_call.1} parent=0
    #allocation2 [shape = 'u8[4096]{0}', space=vmem, size = 0x1000, scoped, tag = 'output window, operand 0, single buffered']
    #allocation3 [shape = 's32[1]{0}', space=sflag, size = 0x4, scoped, tag = 'scoped memory for tpu_custom_call.1']
    %7 = vsyncpa [#allocation3], 0
    // Predicated region
    $region2: #{tpu_custom_call.1} parent=1 // pred_check
      _
    $region3: #{tpu_custom_call.1} parent=1 // pred_check_branch
      %9 = sbr.rel (0) target = $region5
    $region4: #{tpu_custom_call.1} parent=1 // pred_region
      _
    $region5: #{tpu_custom_call.1} parent=1 // pred_fallthru
      _
    // Predicated region
    $region6: #{tpu_custom_call.1} parent=1 // pred_check
      _
    $region7: #{tpu_custom_call.1} parent=1 // pred_check_branch
      %11 = sbr.rel (0) target = $region9
    $region8: #{tpu_custom_call.1} parent=1 // pred_region
      _
    $region9: #{tpu_custom_call.1} parent=1 // pred_fallthru
      _
    %v14 = vld [vmem:[%s0] sm:$0xff]
    %v15 = vld [vmem:[%s0 + $0x8] sm:$0xf]
    %v16 = vld [vmem:[%s0 + $0xc] sm:$0xff]
    %v17 = vld [vmem:[%s0 + $0x14] sm:$0xf]
    %v18 = vld [vmem:[%s0 + $0x18] sm:$0xff]
    %v19 = vld [vmem:[%s0 + $0x20] sm:$0xf]
    %v20 = vld [vmem:[%s0 + $0x24] sm:$0xff]
    %v21 = vld [vmem:[%s0 + $0x2c] sm:$0xf]
    %v22 = vld [vmem:[%s0 + $0x30] sm:$0xff]
    %v23 = vld [vmem:[%s0 + $0x38] sm:$0xf]
    %v24 = vld [vmem:[%s0 + $0x3c] sm:$0xff]
    %v25 = vld [vmem:[%s0 + $0x44] sm:$0xf]
    %v26 = vld [vmem:[%s0 + $0x48] sm:$0xff]
    %v27 = vld [vmem:[%s0 + $0x50] sm:$0xf]
    %v28 = vld [vmem:[%s0 + $0x54] sm:$0xff]
    %v29 = vld [vmem:[%s0 + $0x5c] sm:$0xf]
    %v30 = vld [vmem:[%s0 + $0x60] sm:$0xff]
    %v31 = vld [vmem:[%s0 + $0x68] sm:$0xf]
    %v32 = vld [vmem:[%s0 + $0x6c] sm:$0xff]
    %v33 = vld [vmem:[%s0 + $0x74] sm:$0xf]
    %v34 = vld [vmem:[%s0 + $0x78] sm:$0xff]
    %v35 = vld [vmem:[%s0 + $0x80] sm:$0xf]
    %v36 = vld [vmem:[%s0 + $0x84] sm:$0xff]
    %v37 = vld [vmem:[%s0 + $0x8c] sm:$0xf]
    %v38 = vld [vmem:[%s0 + $0x90] sm:$0xff]
    %v39 = vld [vmem:[%s0 + $0x98] sm:$0xf]
    %v40 = vld [vmem:[%s0 + $0x9c] sm:$0xff]
    %v41 = vld [vmem:[%s0 + $0xa4] sm:$0xf]
    %v42 = vld [vmem:[%s0 + $0xa8] sm:$0xff]
    %v43 = vld [vmem:[%s0 + $0xb0] sm:$0xf]
    %v44 = vld [vmem:[%s0 + $0xb4] sm:$0xff]
    %v45 = vld [vmem:[%s0 + $0xbc] sm:$0xf]
    %v46 = vld [vmem:[%s0 + $0xc0] sm:$0xff]
    %v47 = vld [vmem:[%s0 + $0xc8] sm:$0xf]
    %v48 = vld [vmem:[%s0 + $0xcc] sm:$0xff]
    %v49 = vld [vmem:[%s0 + $0xd4] sm:$0xf]
    %v50 = vld [vmem:[%s0 + $0xd8] sm:$0xff]
    %v51 = vld [vmem:[%s0 + $0xe0] sm:$0xf]
    %v52 = vld [vmem:[%s0 + $0xe4] sm:$0xff]
    %v53 = vld [vmem:[%s0 + $0xec] sm:$0xf]
    %v54 = vld [vmem:[%s0 + $0xf0] sm:$0xff]
    %v55 = vld [vmem:[%s0 + $0xf8] sm:$0xf]
    %v56 = vld [vmem:[%s0 + $0xfc] sm:$0xff]
    %v57 = vld [vmem:[%s0 + $0x104] sm:$0xf]
    %v58 = vld [vmem:[%s0 + $0x108] sm:$0xff]
    %v59 = vld [vmem:[%s0 + $0x110] sm:$0xf]
    %v60 = vld [vmem:[%s0 + $0x114] sm:$0xff]
    %v61 = vld [vmem:[%s0 + $0x11c] sm:$0xf]
    %v62 = vld [vmem:[%s0 + $0x120] sm:$0xff]
    %v63 = vld [vmem:[%s0 + $0x128] sm:$0xf]
    %v64 = vld [vmem:[%s0 + $0x12c] sm:$0xff]
    %v65 = vld [vmem:[%s0 + $0x134] sm:$0xf]
    %v66 = vld [vmem:[%s0 + $0x138] sm:$0xff]
    %v67 = vld [vmem:[%s0 + $0x140] sm:$0xf]
    %v68 = vld [vmem:[%s0 + $0x144] sm:$0xff]
    %v69 = vld [vmem:[%s0 + $0x14c] sm:$0xf]
    %v70 = vld [vmem:[%s0 + $0x150] sm:$0xff]
    %v71 = vld [vmem:[%s0 + $0x158] sm:$0xf]
    %v72 = vld [vmem:[%s0 + $0x15c] sm:$0xff]
    %v73 = vld [vmem:[%s0 + $0x164] sm:$0xf]
    %v74 = vld [vmem:[%s0 + $0x168] sm:$0xff]
    %v75 = vld [vmem:[%s0 + $0x170] sm:$0xf]
    %v76 = vld [vmem:[%s0 + $0x174] sm:$0xff]
    %v77 = vld [vmem:[%s0 + $0x17c] sm:$0xf]
    %v78 = vld [vmem:[%s1] sm:$0xff]
    %v79 = vld [vmem:[%s1 + $0x8] sm:$0xff]
    %v80 = vld [vmem:[%s1 + $0x10] sm:$0xff]
    %v81 = vld [vmem:[%s1 + $0x18] sm:$0xff]
    %v82 = vld [vmem:[%s1 + $0x20] sm:$0xff]
    %v83 = vld [vmem:[%s1 + $0x28] sm:$0xff]
    %v84 = vld [vmem:[%s1 + $0x30] sm:$0xff]
    %v85 = vld [vmem:[%s1 + $0x38] sm:$0xff]
    %v86 = vld [vmem:[%s1 + $0x40] sm:$0xff]
    %v87 = vld [vmem:[%s1 + $0x48] sm:$0xff]
    %v88 = vld [vmem:[%s1 + $0x50] sm:$0xff]
    %v89 = vld [vmem:[%s1 + $0x58] sm:$0xff]
    %v90 = vld [vmem:[%s1 + $0x60] sm:$0xff]
    %v91 = vld [vmem:[%s1 + $0x68] sm:$0xff]
    %v92 = vld [vmem:[%s1 + $0x70] sm:$0xff]
    %v93 = vld [vmem:[%s1 + $0x78] sm:$0xff]
    %v94 = vld [vmem:[%s1 + $0x80] sm:$0xff]
    %v95 = vld [vmem:[%s1 + $0x88] sm:$0xff]
    %v96 = vld [vmem:[%s1 + $0x90] sm:$0xff]
    %v97 = vld [vmem:[%s1 + $0x98] sm:$0xff]
    %v98 = vld [vmem:[%s1 + $0xa0] sm:$0xff]
    %v99 = vld [vmem:[%s1 + $0xa8] sm:$0xff]
    %v100 = vld [vmem:[%s1 + $0xb0] sm:$0xff]
    %v101 = vld [vmem:[%s1 + $0xb8] sm:$0xff]
    %v102 = vld [vmem:[%s1 + $0xc0] sm:$0xff]
    %v103 = vld [vmem:[%s1 + $0xc8] sm:$0xff]
    %v104 = vld [vmem:[%s1 + $0xd0] sm:$0xff]
    %v105 = vld [vmem:[%s1 + $0xd8] sm:$0xff]
    %v106 = vld [vmem:[%s1 + $0xe0] sm:$0xff]
    %v107 = vld [vmem:[%s1 + $0xe8] sm:$0xff]
    %v108 = vld [vmem:[%s1 + $0xf0] sm:$0xff]
    %v109 = vld [vmem:[%s1 + $0xf8] sm:$0xff]
    %v174 = vunpack.c.l.b16 %v14
    %v175 = vunpack.c.h.b16 %v14
    %v176 = vunpack.c.l.b16 %v15
    %v177 = vunpack.c.l.b16 %v16
    %v178 = vunpack.c.h.b16 %v16
    %v179 = vunpack.c.l.b16 %v17
    %v180 = vunpack.c.l.b16 %v18
    %v181 = vunpack.c.h.b16 %v18
    %v182 = vunpack.c.l.b16 %v19
    %v183 = vunpack.c.l.b16 %v20
    %v184 = vunpack.c.h.b16 %v20
    %v185 = vunpack.c.l.b16 %v21
    %v186 = vunpack.c.l.b16 %v22
    %v187 = vunpack.c.h.b16 %v22
    %v188 = vunpack.c.l.b16 %v23
    %v189 = vunpack.c.l.b16 %v24
    %v190 = vunpack.c.h.b16 %v24
    %v191 = vunpack.c.l.b16 %v25
    %v192 = vunpack.c.l.b16 %v26
    %v193 = vunpack.c.h.b16 %v26
    %v194 = vunpack.c.l.b16 %v27
    %v195 = vunpack.c.l.b16 %v28
    %v196 = vunpack.c.h.b16 %v28
    %v197 = vunpack.c.l.b16 %v29
    %v198 = vunpack.c.l.b16 %v30
    %v199 = vunpack.c.h.b16 %v30
    %v200 = vunpack.c.l.b16 %v31
    %v201 = vunpack.c.l.b16 %v32
    %v202 = vunpack.c.h.b16 %v32
    %v203 = vunpack.c.l.b16 %v33
    %v204 = vunpack.c.l.b16 %v34
    %v205 = vunpack.c.h.b16 %v34
    %v206 = vunpack.c.l.b16 %v35
    %v207 = vunpack.c.l.b16 %v36
    %v208 = vunpack.c.h.b16 %v36
    %v209 = vunpack.c.l.b16 %v37
    %v210 = vunpack.c.l.b16 %v38
    %v211 = vunpack.c.h.b16 %v38
    %v212 = vunpack.c.l.b16 %v39
    %v213 = vunpack.c.l.b16 %v40
    %v214 = vunpack.c.h.b16 %v40
    %v215 = vunpack.c.l.b16 %v41
    %v216 = vunpack.c.l.b16 %v42
    %v217 = vunpack.c.h.b16 %v42
    %v218 = vunpack.c.l.b16 %v43
    %v219 = vunpack.c.l.b16 %v44
    %v220 = vunpack.c.h.b16 %v44
    %v221 = vunpack.c.l.b16 %v45
    %v222 = vunpack.c.l.b16 %v46
    %v223 = vunpack.c.h.b16 %v46
    %v224 = vunpack.c.l.b16 %v47
    %v225 = vunpack.c.l.b16 %v48
    %v226 = vunpack.c.h.b16 %v48
    %v227 = vunpack.c.l.b16 %v49
    %v228 = vunpack.c.l.b16 %v50
    %v229 = vunpack.c.h.b16 %v50
    %v230 = vunpack.c.l.b16 %v51
    %v231 = vunpack.c.l.b16 %v52
    %v232 = vunpack.c.h.b16 %v52
    %v233 = vunpack.c.l.b16 %v53
    %v234 = vunpack.c.l.b16 %v54
    %v235 = vunpack.c.h.b16 %v54
    %v236 = vunpack.c.l.b16 %v55
    %v237 = vunpack.c.l.b16 %v56
    %v238 = vunpack.c.h.b16 %v56
    %v239 = vunpack.c.l.b16 %v57
    %v240 = vunpack.c.l.b16 %v58
    %v241 = vunpack.c.h.b16 %v58
    %v242 = vunpack.c.l.b16 %v59
    %v243 = vunpack.c.l.b16 %v60
    %v244 = vunpack.c.h.b16 %v60
    %v245 = vunpack.c.l.b16 %v61
    %v246 = vunpack.c.l.b16 %v62
    %v247 = vunpack.c.h.b16 %v62
    %v248 = vunpack.c.l.b16 %v63
    %v249 = vunpack.c.l.b16 %v64
    %v250 = vunpack.c.h.b16 %v64
    %v251 = vunpack.c.l.b16 %v65
    %v252 = vunpack.c.l.b16 %v66
    %v253 = vunpack.c.h.b16 %v66
    %v254 = vunpack.c.l.b16 %v67
    %v255 = vunpack.c.l.b16 %v68
    %v256 = vunpack.c.h.b16 %v68
    %v257 = vunpack.c.l.b16 %v69
    %v258 = vunpack.c.l.b16 %v70
    %v259 = vunpack.c.h.b16 %v70
    %v260 = vunpack.c.l.b16 %v71
    %v261 = vunpack.c.l.b16 %v72
    %v262 = vunpack.c.h.b16 %v72
    %v263 = vunpack.c.l.b16 %v73
    %v264 = vunpack.c.l.b16 %v74
    %v265 = vunpack.c.h.b16 %v74
    %v266 = vunpack.c.l.b16 %v75
    %v267 = vunpack.c.l.b16 %v76
    %v268 = vunpack.c.h.b16 %v76
    %v269 = vunpack.c.l.b16 %v77
    %v270 = vpack.c.b16 %v177, %v174
    %v271 = vpack.c.b16 %v178, %v175
    %v272 = vpack.c.b16 %v179, %v176
    %v273 = vpack.c.b16 %v183, %v180
    %v274 = vpack.c.b16 %v184, %v181
    %v275 = vpack.c.b16 %v185, %v182
    %v276 = vpack.c.b16 %v189, %v186
    %v277 = vpack.c.b16 %v190, %v187
    %v278 = vpack.c.b16 %v191, %v188
    %v279 = vpack.c.b16 %v195, %v192
    %v280 = vpack.c.b16 %v196, %v193
    %v281 = vpack.c.b16 %v197, %v194
    %v282 = vpack.c.b16 %v201, %v198
    %v283 = vpack.c.b16 %v202, %v199
    %v284 = vpack.c.b16 %v203, %v200
    %v285 = vpack.c.b16 %v207, %v204
    %v286 = vpack.c.b16 %v208, %v205
    %v287 = vpack.c.b16 %v209, %v206
    %v288 = vpack.c.b16 %v213, %v210
    %v289 = vpack.c.b16 %v214, %v211
    %v290 = vpack.c.b16 %v215, %v212
    %v291 = vpack.c.b16 %v219, %v216
    %v292 = vpack.c.b16 %v220, %v217
    %v293 = vpack.c.b16 %v221, %v218
    %v294 = vpack.c.b16 %v225, %v222
    %v295 = vpack.c.b16 %v226, %v223
    %v296 = vpack.c.b16 %v227, %v224
    %v297 = vpack.c.b16 %v231, %v228
    %v298 = vpack.c.b16 %v232, %v229
    %v299 = vpack.c.b16 %v233, %v230
    %v300 = vpack.c.b16 %v237, %v234
    %v301 = vpack.c.b16 %v238, %v235
    %v302 = vpack.c.b16 %v239, %v236
    %v303 = vpack.c.b16 %v243, %v240
    %v304 = vpack.c.b16 %v244, %v241
    %v305 = vpack.c.b16 %v245, %v242
    %v306 = vpack.c.b16 %v249, %v246
    %v307 = vpack.c.b16 %v250, %v247
    %v308 = vpack.c.b16 %v251, %v248
    %v309 = vpack.c.b16 %v255, %v252
    %v310 = vpack.c.b16 %v256, %v253
    %v311 = vpack.c.b16 %v257, %v254
    %v312 = vpack.c.b16 %v261, %v258
    %v313 = vpack.c.b16 %v262, %v259
    %v314 = vpack.c.b16 %v263, %v260
    %v315 = vpack.c.b16 %v267, %v264
    %v316 = vpack.c.b16 %v268, %v265
    %v317 = vpack.c.b16 %v269, %v266
    %v350 = vmax.bf16 %v270, %v271
    %vm351 = vcmask 7168
    %v354 = vsel %vm351, %v272, 4286644096
    %v356 = vmax.bf16 %v350, %v354
    %357 = vmax.xlane.bf16.xlu0 %v356
    %v358 = vpop.xlane.xlu0 %357
    %v359 = vmax.bf16 %v273, %v274
    %v361 = vsel %vm351, %v275, 4286644096
    %v363 = vmax.bf16 %v359, %v361
    %364 = vmax.xlane.bf16.xlu0 %v363
    %v365 = vpop.xlane.xlu0 %364
    %v366 = vmax.bf16 %v276, %v277
    %v368 = vsel %vm351, %v278, 4286644096
    %v370 = vmax.bf16 %v366, %v368
    %371 = vmax.xlane.bf16.xlu0 %v370
    %v372 = vpop.xlane.xlu0 %371
    %v373 = vmax.bf16 %v279, %v280
    %v375 = vsel %vm351, %v281, 4286644096
    %v377 = vmax.bf16 %v373, %v375
    %378 = vmax.xlane.bf16.xlu0 %v377
    %v379 = vpop.xlane.xlu0 %378
    %v380 = vmax.bf16 %v282, %v283
    %v382 = vsel %vm351, %v284, 4286644096
    %v384 = vmax.bf16 %v380, %v382
    %385 = vmax.xlane.bf16.xlu0 %v384
    %v386 = vpop.xlane.xlu0 %385
    %v387 = vmax.bf16 %v285, %v286
    %v389 = vsel %vm351, %v287, 4286644096
    %v391 = vmax.bf16 %v387, %v389
    %392 = vmax.xlane.bf16.xlu0 %v391
    %v393 = vpop.xlane.xlu0 %392
    %v394 = vmax.bf16 %v288, %v289
    %v396 = vsel %vm351, %v290, 4286644096
    %v398 = vmax.bf16 %v394, %v396
    %399 = vmax.xlane.bf16.xlu0 %v398
    %v400 = vpop.xlane.xlu0 %399
    %v401 = vmax.bf16 %v291, %v292
    %v403 = vsel %vm351, %v293, 4286644096
    %v405 = vmax.bf16 %v401, %v403
    %406 = vmax.xlane.bf16.xlu0 %v405
    %v407 = vpop.xlane.xlu0 %406
    %v408 = vmax.bf16 %v294, %v295
    %v410 = vsel %vm351, %v296, 4286644096
    %v412 = vmax.bf16 %v408, %v410
    %413 = vmax.xlane.bf16.xlu0 %v412
    %v414 = vpop.xlane.xlu0 %413
    %v415 = vmax.bf16 %v297, %v298
    %v417 = vsel %vm351, %v299, 4286644096
    %v419 = vmax.bf16 %v415, %v417
    %420 = vmax.xlane.bf16.xlu0 %v419
    %v421 = vpop.xlane.xlu0 %420
    %v422 = vmax.bf16 %v300, %v301
    %v424 = vsel %vm351, %v302, 4286644096
    %v426 = vmax.bf16 %v422, %v424
    %427 = vmax.xlane.bf16.xlu0 %v426
    %v428 = vpop.xlane.xlu0 %427
    %v429 = vmax.bf16 %v303, %v304
    %v431 = vsel %vm351, %v305, 4286644096
    %v433 = vmax.bf16 %v429, %v431
    %434 = vmax.xlane.bf16.xlu0 %v433
    %v435 = vpop.xlane.xlu0 %434
    %v436 = vmax.bf16 %v306, %v307
    %v438 = vsel %vm351, %v308, 4286644096
    %v440 = vmax.bf16 %v436, %v438
    %441 = vmax.xlane.bf16.xlu0 %v440
    %v442 = vpop.xlane.xlu0 %441
    %v443 = vmax.bf16 %v309, %v310
    %v445 = vsel %vm351, %v311, 4286644096
    %v447 = vmax.bf16 %v443, %v445
    %448 = vmax.xlane.bf16.xlu0 %v447
    %v449 = vpop.xlane.xlu0 %448
    %v450 = vmax.bf16 %v312, %v313
    %v452 = vsel %vm351, %v314, 4286644096
    %v454 = vmax.bf16 %v450, %v452
    %455 = vmax.xlane.bf16.xlu0 %v454
    %v456 = vpop.xlane.xlu0 %455
    %v457 = vmax.bf16 %v315, %v316
    %v459 = vsel %vm351, %v317, 4286644096
    %v461 = vmax.bf16 %v457, %v459
    %462 = vmax.xlane.bf16.xlu0 %v461
    %v463 = vpop.xlane.xlu0 %462
    %v464 = vunpack.c.l.bf16 %v358
    %v465 = vunpack.c.h.bf16 %v358
    %v466 = vunpack.c.l.bf16 %v365
    %v467 = vunpack.c.h.bf16 %v365
    %v468 = vunpack.c.l.bf16 %v372
    %v469 = vunpack.c.h.bf16 %v372
    %v470 = vunpack.c.l.bf16 %v379
    %v471 = vunpack.c.h.bf16 %v379
    %v472 = vunpack.c.l.bf16 %v386
    %v473 = vunpack.c.h.bf16 %v386
    %v474 = vunpack.c.l.bf16 %v393
    %v475 = vunpack.c.h.bf16 %v393
    %v476 = vunpack.c.l.bf16 %v400
    %v477 = vunpack.c.h.bf16 %v400
    %v478 = vunpack.c.l.bf16 %v407
    %v479 = vunpack.c.h.bf16 %v407
    %v480 = vunpack.c.l.bf16 %v414
    %v481 = vunpack.c.h.bf16 %v414
    %v482 = vunpack.c.l.bf16 %v421
    %v483 = vunpack.c.h.bf16 %v421
    %v484 = vunpack.c.l.bf16 %v428
    %v485 = vunpack.c.h.bf16 %v428
    %v486 = vunpack.c.l.bf16 %v435
    %v487 = vunpack.c.h.bf16 %v435
    %v488 = vunpack.c.l.bf16 %v442
    %v489 = vunpack.c.h.bf16 %v442
    %v490 = vunpack.c.l.bf16 %v449
    %v491 = vunpack.c.h.bf16 %v449
    %v492 = vunpack.c.l.bf16 %v456
    %v493 = vunpack.c.h.bf16 %v456
    %v494 = vunpack.c.l.bf16 %v463
    %v495 = vunpack.c.h.bf16 %v463
    %v496 = vunpack.c.l.bf16 %v14
    %v497 = vunpack.c.h.bf16 %v14
    %v498 = vunpack.c.l.bf16 %v15
    %v499 = vunpack.c.l.bf16 %v16
    %v500 = vunpack.c.h.bf16 %v16
    %v501 = vunpack.c.l.bf16 %v17
    %v502 = vunpack.c.l.bf16 %v18
    %v503 = vunpack.c.h.bf16 %v18
    %v504 = vunpack.c.l.bf16 %v19
    %v505 = vunpack.c.l.bf16 %v20
    %v506 = vunpack.c.h.bf16 %v20
    %v507 = vunpack.c.l.bf16 %v21
    %v508 = vunpack.c.l.bf16 %v22
    %v509 = vunpack.c.h.bf16 %v22
    %v510 = vunpack.c.l.bf16 %v23
    %v511 = vunpack.c.l.bf16 %v24
    %v512 = vunpack.c.h.bf16 %v24
    %v513 = vunpack.c.l.bf16 %v25
    %v514 = vunpack.c.l.bf16 %v26
    %v515 = vunpack.c.h.bf16 %v26
    %v516 = vunpack.c.l.bf16 %v27
    %v517 = vunpack.c.l.bf16 %v28
    %v518 = vunpack.c.h.bf16 %v28
    %v519 = vunpack.c.l.bf16 %v29
    %v520 = vunpack.c.l.bf16 %v30
    %v521 = vunpack.c.h.bf16 %v30
    %v522 = vunpack.c.l.bf16 %v31
    %v523 = vunpack.c.l.bf16 %v32
    %v524 = vunpack.c.h.bf16 %v32
    %v525 = vunpack.c.l.bf16 %v33
    %v526 = vunpack.c.l.bf16 %v34
    %v527 = vunpack.c.h.bf16 %v34
    %v528 = vunpack.c.l.bf16 %v35
    %v529 = vunpack.c.l.bf16 %v36
    %v530 = vunpack.c.h.bf16 %v36
    %v531 = vunpack.c.l.bf16 %v37
    %v532 = vunpack.c.l.bf16 %v38
    %v533 = vunpack.c.h.bf16 %v38
    %v534 = vunpack.c.l.bf16 %v39
    %v535 = vunpack.c.l.bf16 %v40
    %v536 = vunpack.c.h.bf16 %v40
    %v537 = vunpack.c.l.bf16 %v41
    %v538 = vunpack.c.l.bf16 %v42
    %v539 = vunpack.c.h.bf16 %v42
    %v540 = vunpack.c.l.bf16 %v43
    %v541 = vunpack.c.l.bf16 %v44
    %v542 = vunpack.c.h.bf16 %v44
    %v543 = vunpack.c.l.bf16 %v45
    %v544 = vunpack.c.l.bf16 %v46
    %v545 = vunpack.c.h.bf16 %v46
    %v546 = vunpack.c.l.bf16 %v47
    %v547 = vunpack.c.l.bf16 %v48
    %v548 = vunpack.c.h.bf16 %v48
    %v549 = vunpack.c.l.bf16 %v49
    %v550 = vunpack.c.l.bf16 %v50
    %v551 = vunpack.c.h.bf16 %v50
    %v552 = vunpack.c.l.bf16 %v51
    %v553 = vunpack.c.l.bf16 %v52
    %v554 = vunpack.c.h.bf16 %v52
    %v555 = vunpack.c.l.bf16 %v53
    %v556 = vunpack.c.l.bf16 %v54
    %v557 = vunpack.c.h.bf16 %v54
    %v558 = vunpack.c.l.bf16 %v55
    %v559 = vunpack.c.l.bf16 %v56
    %v560 = vunpack.c.h.bf16 %v56
    %v561 = vunpack.c.l.bf16 %v57
    %v562 = vunpack.c.l.bf16 %v58
    %v563 = vunpack.c.h.bf16 %v58
    %v564 = vunpack.c.l.bf16 %v59
    %v565 = vunpack.c.l.bf16 %v60
    %v566 = vunpack.c.h.bf16 %v60
    %v567 = vunpack.c.l.bf16 %v61
    %v568 = vunpack.c.l.bf16 %v62
    %v569 = vunpack.c.h.bf16 %v62
    %v570 = vunpack.c.l.bf16 %v63
    %v571 = vunpack.c.l.bf16 %v64
    %v572 = vunpack.c.h.bf16 %v64
    %v573 = vunpack.c.l.bf16 %v65
    %v574 = vunpack.c.l.bf16 %v66
    %v575 = vunpack.c.h.bf16 %v66
    %v576 = vunpack.c.l.bf16 %v67
    %v577 = vunpack.c.l.bf16 %v68
    %v578 = vunpack.c.h.bf16 %v68
    %v579 = vunpack.c.l.bf16 %v69
    %v580 = vunpack.c.l.bf16 %v70
    %v581 = vunpack.c.h.bf16 %v70
    %v582 = vunpack.c.l.bf16 %v71
    %v583 = vunpack.c.l.bf16 %v72
    %v584 = vunpack.c.h.bf16 %v72
    %v585 = vunpack.c.l.bf16 %v73
    %v586 = vunpack.c.l.bf16 %v74
    %v587 = vunpack.c.h.bf16 %v74
    %v588 = vunpack.c.l.bf16 %v75
    %v589 = vunpack.c.l.bf16 %v76
    %v590 = vunpack.c.h.bf16 %v76
    %v591 = vunpack.c.l.bf16 %v77
    %v592 = vsub.f32 %v496, %v464
    %v593 = vsub.f32 %v497, %v464
    %v594 = vsub.f32 %v498, %v464
    %v595 = vsub.f32 %v499, %v465
    %v596 = vsub.f32 %v500, %v465
    %v597 = vsub.f32 %v501, %v465
    %v598 = vsub.f32 %v502, %v466
    %v599 = vsub.f32 %v503, %v466
    %v600 = vsub.f32 %v504, %v466
    %v601 = vsub.f32 %v505, %v467
    %v602 = vsub.f32 %v506, %v467
    %v603 = vsub.f32 %v507, %v467
    %v604 = vsub.f32 %v508, %v468
    %v605 = vsub.f32 %v509, %v468
    %v606 = vsub.f32 %v510, %v468
    %v607 = vsub.f32 %v511, %v469
    %v608 = vsub.f32 %v512, %v469
    %v609 = vsub.f32 %v513, %v469
    %v610 = vsub.f32 %v514, %v470
    %v611 = vsub.f32 %v515, %v470
    %v612 = vsub.f32 %v516, %v470
    %v613 = vsub.f32 %v517, %v471
    %v614 = vsub.f32 %v518, %v471
    %v615 = vsub.f32 %v519, %v471
    %v616 = vsub.f32 %v520, %v472
    %v617 = vsub.f32 %v521, %v472
    %v618 = vsub.f32 %v522, %v472
    %v619 = vsub.f32 %v523, %v473
    %v620 = vsub.f32 %v524, %v473
    %v621 = vsub.f32 %v525, %v473
    %v622 = vsub.f32 %v526, %v474
    %v623 = vsub.f32 %v527, %v474
    %v624 = vsub.f32 %v528, %v474
    %v625 = vsub.f32 %v529, %v475
    %v626 = vsub.f32 %v530, %v475
    %v627 = vsub.f32 %v531, %v475
    %v628 = vsub.f32 %v532, %v476
    %v629 = vsub.f32 %v533, %v476
    %v630 = vsub.f32 %v534, %v476
    %v631 = vsub.f32 %v535, %v477
    %v632 = vsub.f32 %v536, %v477
    %v633 = vsub.f32 %v537, %v477
    %v634 = vsub.f32 %v538, %v478
    %v635 = vsub.f32 %v539, %v478
    %v636 = vsub.f32 %v540, %v478
    %v637 = vsub.f32 %v541, %v479
    %v638 = vsub.f32 %v542, %v479
    %v639 = vsub.f32 %v543, %v479
    %v640 = vsub.f32 %v544, %v480
    %v641 = vsub.f32 %v545, %v480
    %v642 = vsub.f32 %v546, %v480
    %v643 = vsub.f32 %v547, %v481
    %v644 = vsub.f32 %v548, %v481
    %v645 = vsub.f32 %v549, %v481
    %v646 = vsub.f32 %v550, %v482
    %v647 = vsub.f32 %v551, %v482
    %v648 = vsub.f32 %v552, %v482
    %v649 = vsub.f32 %v553, %v483
    %v650 = vsub.f32 %v554, %v483
    %v651 = vsub.f32 %v555, %v483
    %v652 = vsub.f32 %v556, %v484
    %v653 = vsub.f32 %v557, %v484
    %v654 = vsub.f32 %v558, %v484
    %v655 = vsub.f32 %v559, %v485
    %v656 = vsub.f32 %v560, %v485
    %v657 = vsub.f32 %v561, %v485
    %v658 = vsub.f32 %v562, %v486
    %v659 = vsub.f32 %v563, %v486
    %v660 = vsub.f32 %v564, %v486
    %v661 = vsub.f32 %v565, %v487
    %v662 = vsub.f32 %v566, %v487
    %v663 = vsub.f32 %v567, %v487
    %v664 = vsub.f32 %v568, %v488
    %v665 = vsub.f32 %v569, %v488
    %v666 = vsub.f32 %v570, %v488
    %v667 = vsub.f32 %v571, %v489
    %v668 = vsub.f32 %v572, %v489
    %v669 = vsub.f32 %v573, %v489
    %v670 = vsub.f32 %v574, %v490
    %v671 = vsub.f32 %v575, %v490
    %v672 = vsub.f32 %v576, %v490
    %v673 = vsub.f32 %v577, %v491
    %v674 = vsub.f32 %v578, %v491
    %v675 = vsub.f32 %v579, %v491
    %v676 = vsub.f32 %v580, %v492
    %v677 = vsub.f32 %v581, %v492
    %v678 = vsub.f32 %v582, %v492
    %v679 = vsub.f32 %v583, %v493
    %v680 = vsub.f32 %v584, %v493
    %v681 = vsub.f32 %v585, %v493
    %v682 = vsub.f32 %v586, %v494
    %v683 = vsub.f32 %v587, %v494
    %v684 = vsub.f32 %v588, %v494
    %v685 = vsub.f32 %v589, %v495
    %v686 = vsub.f32 %v590, %v495
    %v687 = vsub.f32 %v591, %v495
    %v688 = vmul.f32 %v592, 1.442695
    %v689 = vpow.pop %v688
    %v690 = vmul.f32 %v593, 1.442695
    %v691 = vpow.pop %v690
    %v692 = vmul.f32 %v594, 1.442695
    %v693 = vpow.pop %v692
    %v694 = vmul.f32 %v595, 1.442695
    %v695 = vpow.pop %v694
    %v696 = vmul.f32 %v596, 1.442695
    %v697 = vpow.pop %v696
    %v698 = vmul.f32 %v597, 1.442695
    %v699 = vpow.pop %v698
    %v700 = vmul.f32 %v598, 1.442695
    %v701 = vpow.pop %v700
    %v702 = vmul.f32 %v599, 1.442695
    %v703 = vpow.pop %v702
    %v704 = vmul.f32 %v600, 1.442695
    %v705 = vpow.pop %v704
    %v706 = vmul.f32 %v601, 1.442695
    %v707 = vpow.pop %v706
    %v708 = vmul.f32 %v602, 1.442695
    %v709 = vpow.pop %v708
    %v710 = vmul.f32 %v603, 1.442695
    %v711 = vpow.pop %v710
    %v712 = vmul.f32 %v604, 1.442695
    %v713 = vpow.pop %v712
    %v714 = vmul.f32 %v605, 1.442695
    %v715 = vpow.pop %v714
    %v716 = vmul.f32 %v606, 1.442695
    %v717 = vpow.pop %v716
    %v718 = vmul.f32 %v607, 1.442695
    %v719 = vpow.pop %v718
    %v720 = vmul.f32 %v608, 1.442695
    %v721 = vpow.pop %v720
    %v722 = vmul.f32 %v609, 1.442695
    %v723 = vpow.pop %v722
    %v724 = vmul.f32 %v610, 1.442695
    %v725 = vpow.pop %v724
    %v726 = vmul.f32 %v611, 1.442695
    %v727 = vpow.pop %v726
    %v728 = vmul.f32 %v612, 1.442695
    %v729 = vpow.pop %v728
    %v730 = vmul.f32 %v613, 1.442695
    %v731 = vpow.pop %v730
    %v732 = vmul.f32 %v614, 1.442695
    %v733 = vpow.pop %v732
    %v734 = vmul.f32 %v615, 1.442695
    %v735 = vpow.pop %v734
    %v736 = vmul.f32 %v616, 1.442695
    %v737 = vpow.pop %v736
    %v738 = vmul.f32 %v617, 1.442695
    %v739 = vpow.pop %v738
    %v740 = vmul.f32 %v618, 1.442695
    %v741 = vpow.pop %v740
    %v742 = vmul.f32 %v619, 1.442695
    %v743 = vpow.pop %v742
    %v744 = vmul.f32 %v620, 1.442695
    %v745 = vpow.pop %v744
    %v746 = vmul.f32 %v621, 1.442695
    %v747 = vpow.pop %v746
    %v748 = vmul.f32 %v622, 1.442695
    %v749 = vpow.pop %v748
    %v750 = vmul.f32 %v623, 1.442695
    %v751 = vpow.pop %v750
    %v752 = vmul.f32 %v624, 1.442695
    %v753 = vpow.pop %v752
    %v754 = vmul.f32 %v625, 1.442695
    %v755 = vpow.pop %v754
    %v756 = vmul.f32 %v626, 1.442695
    %v757 = vpow.pop %v756
    %v758 = vmul.f32 %v627, 1.442695
    %v759 = vpow.pop %v758
    %v760 = vmul.f32 %v628, 1.442695
    %v761 = vpow.pop %v760
    %v762 = vmul.f32 %v629, 1.442695
    %v763 = vpow.pop %v762
    %v764 = vmul.f32 %v630, 1.442695
    %v765 = vpow.pop %v764
    %v766 = vmul.f32 %v631, 1.442695
    %v767 = vpow.pop %v766
    %v768 = vmul.f32 %v632, 1.442695
    %v769 = vpow.pop %v768
    %v770 = vmul.f32 %v633, 1.442695
    %v771 = vpow.pop %v770
    %v772 = vmul.f32 %v634, 1.442695
    %v773 = vpow.pop %v772
    %v774 = vmul.f32 %v635, 1.442695
    %v775 = vpow.pop %v774
    %v776 = vmul.f32 %v636, 1.442695
    %v777 = vpow.pop %v776
    %v778 = vmul.f32 %v637, 1.442695
    %v779 = vpow.pop %v778
    %v780 = vmul.f32 %v638, 1.442695
    %v781 = vpow.pop %v780
    %v782 = vmul.f32 %v639, 1.442695
    %v783 = vpow.pop %v782
    %v784 = vmul.f32 %v640, 1.442695
    %v785 = vpow.pop %v784
    %v786 = vmul.f32 %v641, 1.442695
    %v787 = vpow.pop %v786
    %v788 = vmul.f32 %v642, 1.442695
    %v789 = vpow.pop %v788
    %v790 = vmul.f32 %v643, 1.442695
    %v791 = vpow.pop %v790
    %v792 = vmul.f32 %v644, 1.442695
    %v793 = vpow.pop %v792
    %v794 = vmul.f32 %v645, 1.442695
    %v795 = vpow.pop %v794
    %v796 = vmul.f32 %v646, 1.442695
    %v797 = vpow.pop %v796
    %v798 = vmul.f32 %v647, 1.442695
    %v799 = vpow.pop %v798
    %v800 = vmul.f32 %v648, 1.442695
    %v801 = vpow.pop %v800
    %v802 = vmul.f32 %v649, 1.442695
    %v803 = vpow.pop %v802
    %v804 = vmul.f32 %v650, 1.442695
    %v805 = vpow.pop %v804
    %v806 = vmul.f32 %v651, 1.442695
    %v807 = vpow.pop %v806
    %v808 = vmul.f32 %v652, 1.442695
    %v809 = vpow.pop %v808
    %v810 = vmul.f32 %v653, 1.442695
    %v811 = vpow.pop %v810
    %v812 = vmul.f32 %v654, 1.442695
    %v813 = vpow.pop %v812
    %v814 = vmul.f32 %v655, 1.442695
    %v815 = vpow.pop %v814
    %v816 = vmul.f32 %v656, 1.442695
    %v817 = vpow.pop %v816
    %v818 = vmul.f32 %v657, 1.442695
    %v819 = vpow.pop %v818
    %v820 = vmul.f32 %v658, 1.442695
    %v821 = vpow.pop %v820
    %v822 = vmul.f32 %v659, 1.442695
    %v823 = vpow.pop %v822
    %v824 = vmul.f32 %v660, 1.442695
    %v825 = vpow.pop %v824
    %v826 = vmul.f32 %v661, 1.442695
    %v827 = vpow.pop %v826
    %v828 = vmul.f32 %v662, 1.442695
    %v829 = vpow.pop %v828
    %v830 = vmul.f32 %v663, 1.442695
    %v831 = vpow.pop %v830
    %v832 = vmul.f32 %v664, 1.442695
    %v833 = vpow.pop %v832
    %v834 = vmul.f32 %v665, 1.442695
    %v835 = vpow.pop %v834
    %v836 = vmul.f32 %v666, 1.442695
    %v837 = vpow.pop %v836
    %v838 = vmul.f32 %v667, 1.442695
    %v839 = vpow.pop %v838
    %v840 = vmul.f32 %v668, 1.442695
    %v841 = vpow.pop %v840
    %v842 = vmul.f32 %v669, 1.442695
    %v843 = vpow.pop %v842
    %v844 = vmul.f32 %v670, 1.442695
    %v845 = vpow.pop %v844
    %v846 = vmul.f32 %v671, 1.442695
    %v847 = vpow.pop %v846
    %v848 = vmul.f32 %v672, 1.442695
    %v849 = vpow.pop %v848
    %v850 = vmul.f32 %v673, 1.442695
    %v851 = vpow.pop %v850
    %v852 = vmul.f32 %v674, 1.442695
    %v853 = vpow.pop %v852
    %v854 = vmul.f32 %v675, 1.442695
    %v855 = vpow.pop %v854
    %v856 = vmul.f32 %v676, 1.442695
    %v857 = vpow.pop %v856
    %v858 = vmul.f32 %v677, 1.442695
    %v859 = vpow.pop %v858
    %v860 = vmul.f32 %v678, 1.442695
    %v861 = vpow.pop %v860
    %v862 = vmul.f32 %v679, 1.442695
    %v863 = vpow.pop %v862
    %v864 = vmul.f32 %v680, 1.442695
    %v865 = vpow.pop %v864
    %v866 = vmul.f32 %v681, 1.442695
    %v867 = vpow.pop %v866
    %v868 = vmul.f32 %v682, 1.442695
    %v869 = vpow.pop %v868
    %v870 = vmul.f32 %v683, 1.442695
    %v871 = vpow.pop %v870
    %v872 = vmul.f32 %v684, 1.442695
    %v873 = vpow.pop %v872
    %v874 = vmul.f32 %v685, 1.442695
    %v875 = vpow.pop %v874
    %v876 = vmul.f32 %v686, 1.442695
    %v877 = vpow.pop %v876
    %v878 = vmul.f32 %v687, 1.442695
    %v879 = vpow.pop %v878
    %v880 = vadd.f32 %v689, %v691
    %v881 = vsel %vm351, %v693, 0.0
    %v882 = vadd.f32 %v880, %v881
    %883 = vadd.xlane.f32.xlu0 %v882
    %v884 = vpop.xlane.xlu0 %883
    %v885 = vadd.f32 %v695, %v697
    %v886 = vsel %vm351, %v699, 0.0
    %v887 = vadd.f32 %v885, %v886
    %888 = vadd.xlane.f32.xlu0 %v887
    %v889 = vpop.xlane.xlu0 %888
    %v890 = vadd.f32 %v701, %v703
    %v891 = vsel %vm351, %v705, 0.0
    %v892 = vadd.f32 %v890, %v891
    %893 = vadd.xlane.f32.xlu0 %v892
    %v894 = vpop.xlane.xlu0 %893
    %v895 = vadd.f32 %v707, %v709
    %v896 = vsel %vm351, %v711, 0.0
    %v897 = vadd.f32 %v895, %v896
    %898 = vadd.xlane.f32.xlu0 %v897
    %v899 = vpop.xlane.xlu0 %898
    %v900 = vadd.f32 %v713, %v715
    %v901 = vsel %vm351, %v717, 0.0
    %v902 = vadd.f32 %v900, %v901
    %903 = vadd.xlane.f32.xlu0 %v902
    %v904 = vpop.xlane.xlu0 %903
    %v905 = vadd.f32 %v719, %v721
    %v906 = vsel %vm351, %v723, 0.0
    %v907 = vadd.f32 %v905, %v906
    %908 = vadd.xlane.f32.xlu0 %v907
    %v909 = vpop.xlane.xlu0 %908
    %v910 = vadd.f32 %v725, %v727
    %v911 = vsel %vm351, %v729, 0.0
    %v912 = vadd.f32 %v910, %v911
    %913 = vadd.xlane.f32.xlu0 %v912
    %v914 = vpop.xlane.xlu0 %913
    %v915 = vadd.f32 %v731, %v733
    %v916 = vsel %vm351, %v735, 0.0
    %v917 = vadd.f32 %v915, %v916
    %918 = vadd.xlane.f32.xlu0 %v917
    %v919 = vpop.xlane.xlu0 %918
    %v920 = vadd.f32 %v737, %v739
    %v921 = vsel %vm351, %v741, 0.0
    %v922 = vadd.f32 %v920, %v921
    %923 = vadd.xlane.f32.xlu0 %v922
    %v924 = vpop.xlane.xlu0 %923
    %v925 = vadd.f32 %v743, %v745
    %v926 = vsel %vm351, %v747, 0.0
    %v927 = vadd.f32 %v925, %v926
    %928 = vadd.xlane.f32.xlu0 %v927
    %v929 = vpop.xlane.xlu0 %928
    %v930 = vadd.f32 %v749, %v751
    %v931 = vsel %vm351, %v753, 0.0
    %v932 = vadd.f32 %v930, %v931
    %933 = vadd.xlane.f32.xlu0 %v932
    %v934 = vpop.xlane.xlu0 %933
    %v935 = vadd.f32 %v755, %v757
    %v936 = vsel %vm351, %v759, 0.0
    %v937 = vadd.f32 %v935, %v936
    %938 = vadd.xlane.f32.xlu0 %v937
    %v939 = vpop.xlane.xlu0 %938
    %v940 = vadd.f32 %v761, %v763
    %v941 = vsel %vm351, %v765, 0.0
    %v942 = vadd.f32 %v940, %v941
    %943 = vadd.xlane.f32.xlu0 %v942
    %v944 = vpop.xlane.xlu0 %943
    %v945 = vadd.f32 %v767, %v769
    %v946 = vsel %vm351, %v771, 0.0
    %v947 = vadd.f32 %v945, %v946
    %948 = vadd.xlane.f32.xlu0 %v947
    %v949 = vpop.xlane.xlu0 %948
    %v950 = vadd.f32 %v773, %v775
    %v951 = vsel %vm351, %v777, 0.0
    %v952 = vadd.f32 %v950, %v951
    %953 = vadd.xlane.f32.xlu0 %v952
    %v954 = vpop.xlane.xlu0 %953
    %v955 = vadd.f32 %v779, %v781
    %v956 = vsel %vm351, %v783, 0.0
    %v957 = vadd.f32 %v955, %v956
    %958 = vadd.xlane.f32.xlu0 %v957
    %v959 = vpop.xlane.xlu0 %958
    %v960 = vadd.f32 %v785, %v787
    %v961 = vsel %vm351, %v789, 0.0
    %v962 = vadd.f32 %v960, %v961
    %963 = vadd.xlane.f32.xlu0 %v962
    %v964 = vpop.xlane.xlu0 %963
    %v965 = vadd.f32 %v791, %v793
    %v966 = vsel %vm351, %v795, 0.0
    %v967 = vadd.f32 %v965, %v966
    %968 = vadd.xlane.f32.xlu0 %v967
    %v969 = vpop.xlane.xlu0 %968
    %v970 = vadd.f32 %v797, %v799
    %v971 = vsel %vm351, %v801, 0.0
    %v972 = vadd.f32 %v970, %v971
    %973 = vadd.xlane.f32.xlu0 %v972
    %v974 = vpop.xlane.xlu0 %973
    %v975 = vadd.f32 %v803, %v805
    %v976 = vsel %vm351, %v807, 0.0
    %v977 = vadd.f32 %v975, %v976
    %978 = vadd.xlane.f32.xlu0 %v977
    %v979 = vpop.xlane.xlu0 %978
    %v980 = vadd.f32 %v809, %v811
    %v981 = vsel %vm351, %v813, 0.0
    %v982 = vadd.f32 %v980, %v981
    %983 = vadd.xlane.f32.xlu0 %v982
    %v984 = vpop.xlane.xlu0 %983
    %v985 = vadd.f32 %v815, %v817
    %v986 = vsel %vm351, %v819, 0.0
    %v987 = vadd.f32 %v985, %v986
    %988 = vadd.xlane.f32.xlu0 %v987
    %v989 = vpop.xlane.xlu0 %988
    %v990 = vadd.f32 %v821, %v823
    %v991 = vsel %vm351, %v825, 0.0
    %v992 = vadd.f32 %v990, %v991
    %993 = vadd.xlane.f32.xlu0 %v992
    %v994 = vpop.xlane.xlu0 %993
    %v995 = vadd.f32 %v827, %v829
    %v996 = vsel %vm351, %v831, 0.0
    %v997 = vadd.f32 %v995, %v996
    %998 = vadd.xlane.f32.xlu0 %v997
    %v999 = vpop.xlane.xlu0 %998
    %v1000 = vadd.f32 %v833, %v835
    %v1001 = vsel %vm351, %v837, 0.0
    %v1002 = vadd.f32 %v1000, %v1001
    %1003 = vadd.xlane.f32.xlu0 %v1002
    %v1004 = vpop.xlane.xlu0 %1003
    %v1005 = vadd.f32 %v839, %v841
    %v1006 = vsel %vm351, %v843, 0.0
    %v1007 = vadd.f32 %v1005, %v1006
    %1008 = vadd.xlane.f32.xlu0 %v1007
    %v1009 = vpop.xlane.xlu0 %1008
    %v1010 = vadd.f32 %v845, %v847
    %v1011 = vsel %vm351, %v849, 0.0
    %v1012 = vadd.f32 %v1010, %v1011
    %1013 = vadd.xlane.f32.xlu0 %v1012
    %v1014 = vpop.xlane.xlu0 %1013
    %v1015 = vadd.f32 %v851, %v853
    %v1016 = vsel %vm351, %v855, 0.0
    %v1017 = vadd.f32 %v1015, %v1016
    %1018 = vadd.xlane.f32.xlu0 %v1017
    %v1019 = vpop.xlane.xlu0 %1018
    %v1020 = vadd.f32 %v857, %v859
    %v1021 = vsel %vm351, %v861, 0.0
    %v1022 = vadd.f32 %v1020, %v1021
    %1023 = vadd.xlane.f32.xlu0 %v1022
    %v1024 = vpop.xlane.xlu0 %1023
    %v1025 = vadd.f32 %v863, %v865
    %v1026 = vsel %vm351, %v867, 0.0
    %v1027 = vadd.f32 %v1025, %v1026
    %1028 = vadd.xlane.f32.xlu0 %v1027
    %v1029 = vpop.xlane.xlu0 %1028
    %v1030 = vadd.f32 %v869, %v871
    %v1031 = vsel %vm351, %v873, 0.0
    %v1032 = vadd.f32 %v1030, %v1031
    %1033 = vadd.xlane.f32.xlu0 %v1032
    %v1034 = vpop.xlane.xlu0 %1033
    %v1035 = vadd.f32 %v875, %v877
    %v1036 = vsel %vm351, %v879, 0.0
    %v1037 = vadd.f32 %v1035, %v1036
    %1038 = vadd.xlane.f32.xlu0 %v1037
    %v1039 = vpop.xlane.xlu0 %1038
    %v1040 = vlog2.pop %v884
    %v1041 = vmul.f32 %v1040, 0.6931472
    %v1042 = vlog2.pop %v889
    %v1043 = vmul.f32 %v1042, 0.6931472
    %v1044 = vlog2.pop %v894
    %v1045 = vmul.f32 %v1044, 0.6931472
    %v1046 = vlog2.pop %v899
    %v1047 = vmul.f32 %v1046, 0.6931472
    %v1048 = vlog2.pop %v904
    %v1049 = vmul.f32 %v1048, 0.6931472
    %v1050 = vlog2.pop %v909
    %v1051 = vmul.f32 %v1050, 0.6931472
    %v1052 = vlog2.pop %v914
    %v1053 = vmul.f32 %v1052, 0.6931472
    %v1054 = vlog2.pop %v919
    %v1055 = vmul.f32 %v1054, 0.6931472
    %v1056 = vlog2.pop %v924
    %v1057 = vmul.f32 %v1056, 0.6931472
    %v1058 = vlog2.pop %v929
    %v1059 = vmul.f32 %v1058, 0.6931472
    %v1060 = vlog2.pop %v934
    %v1061 = vmul.f32 %v1060, 0.6931472
    %v1062 = vlog2.pop %v939
    %v1063 = vmul.f32 %v1062, 0.6931472
    %v1064 = vlog2.pop %v944
    %v1065 = vmul.f32 %v1064, 0.6931472
    %v1066 = vlog2.pop %v949
    %v1067 = vmul.f32 %v1066, 0.6931472
    %v1068 = vlog2.pop %v954
    %v1069 = vmul.f32 %v1068, 0.6931472
    %v1070 = vlog2.pop %v959
    %v1071 = vmul.f32 %v1070, 0.6931472
    %v1072 = vlog2.pop %v964
    %v1073 = vmul.f32 %v1072, 0.6931472
    %v1074 = vlog2.pop %v969
    %v1075 = vmul.f32 %v1074, 0.6931472
    %v1076 = vlog2.pop %v974
    %v1077 = vmul.f32 %v1076, 0.6931472
    %v1078 = vlog2.pop %v979
    %v1079 = vmul.f32 %v1078, 0.6931472
    %v1080 = vlog2.pop %v984
    %v1081 = vmul.f32 %v1080, 0.6931472
    %v1082 = vlog2.pop %v989
    %v1083 = vmul.f32 %v1082, 0.6931472
    %v1084 = vlog2.pop %v994
    %v1085 = vmul.f32 %v1084, 0.6931472
    %v1086 = vlog2.pop %v999
    %v1087 = vmul.f32 %v1086, 0.6931472
    %v1088 = vlog2.pop %v1004
    %v1089 = vmul.f32 %v1088, 0.6931472
    %v1090 = vlog2.pop %v1009
    %v1091 = vmul.f32 %v1090, 0.6931472
    %v1092 = vlog2.pop %v1014
    %v1093 = vmul.f32 %v1092, 0.6931472
    %v1094 = vlog2.pop %v1019
    %v1095 = vmul.f32 %v1094, 0.6931472
    %v1096 = vlog2.pop %v1024
    %v1097 = vmul.f32 %v1096, 0.6931472
    %v1098 = vlog2.pop %v1029
    %v1099 = vmul.f32 %v1098, 0.6931472
    %v1100 = vlog2.pop %v1034
    %v1101 = vmul.f32 %v1100, 0.6931472
    %v1102 = vlog2.pop %v1039
    %v1103 = vmul.f32 %v1102, 0.6931472
    %v1104 = vadd.f32 %v1041, %v464
    %v1105 = vadd.f32 %v1043, %v465
    %v1106 = vadd.f32 %v1045, %v466
    %v1107 = vadd.f32 %v1047, %v467
    %v1108 = vadd.f32 %v1049, %v468
    %v1109 = vadd.f32 %v1051, %v469
    %v1110 = vadd.f32 %v1053, %v470
    %v1111 = vadd.f32 %v1055, %v471
    %v1112 = vadd.f32 %v1057, %v472
    %v1113 = vadd.f32 %v1059, %v473
    %v1114 = vadd.f32 %v1061, %v474
    %v1115 = vadd.f32 %v1063, %v475
    %v1116 = vadd.f32 %v1065, %v476
    %v1117 = vadd.f32 %v1067, %v477
    %v1118 = vadd.f32 %v1069, %v478
    %v1119 = vadd.f32 %v1071, %v479
    %v1120 = vadd.f32 %v1073, %v480
    %v1121 = vadd.f32 %v1075, %v481
    %v1122 = vadd.f32 %v1077, %v482
    %v1123 = vadd.f32 %v1079, %v483
    %v1124 = vadd.f32 %v1081, %v484
    %v1125 = vadd.f32 %v1083, %v485
    %v1126 = vadd.f32 %v1085, %v486
    %v1127 = vadd.f32 %v1087, %v487
    %v1128 = vadd.f32 %v1089, %v488
    %v1129 = vadd.f32 %v1091, %v489
    %v1130 = vadd.f32 %v1093, %v490
    %v1131 = vadd.f32 %v1095, %v491
    %v1132 = vadd.f32 %v1097, %v492
    %v1133 = vadd.f32 %v1099, %v493
    %v1134 = vadd.f32 %v1101, %v494
    %v1135 = vadd.f32 %v1103, %v495
    %v1136 = vlaneseq
    %v1137 = vand.u32 %v1136, 127
    %v1138 = vadd.s32 %v1137, 128
    %v1139 = vadd.s32 %v1137, 256
    %1140 = vset.pattern.permute.xlu0 0
    %1141 = vperm.xlu0 %1140, %v78
    %v1142 = vpop.permute.xlu0 %1141
    %1143 = vset.pattern.permute.xlu0 0
    %1144 = vperm.xlu0 %1143, %v79
    %v1145 = vpop.permute.xlu0 %1144
    %1146 = vset.pattern.permute.xlu0 0
    %1147 = vperm.xlu0 %1146, %v80
    %v1148 = vpop.permute.xlu0 %1147
    %1149 = vset.pattern.permute.xlu0 0
    %1150 = vperm.xlu0 %1149, %v81
    %v1151 = vpop.permute.xlu0 %1150
    %1152 = vset.pattern.permute.xlu0 0
    %1153 = vperm.xlu0 %1152, %v82
    %v1154 = vpop.permute.xlu0 %1153
    %1155 = vset.pattern.permute.xlu0 0
    %1156 = vperm.xlu0 %1155, %v83
    %v1157 = vpop.permute.xlu0 %1156
    %1158 = vset.pattern.permute.xlu0 0
    %1159 = vperm.xlu0 %1158, %v84
    %v1160 = vpop.permute.xlu0 %1159
    %1161 = vset.pattern.permute.xlu0 0
    %1162 = vperm.xlu0 %1161, %v85
    %v1163 = vpop.permute.xlu0 %1162
    %1164 = vset.pattern.permute.xlu0 0
    %1165 = vperm.xlu0 %1164, %v86
    %v1166 = vpop.permute.xlu0 %1165
    %1167 = vset.pattern.permute.xlu0 0
    %1168 = vperm.xlu0 %1167, %v87
    %v1169 = vpop.permute.xlu0 %1168
    %1170 = vset.pattern.permute.xlu0 0
    %1171 = vperm.xlu0 %1170, %v88
    %v1172 = vpop.permute.xlu0 %1171
    %1173 = vset.pattern.permute.xlu0 0
    %1174 = vperm.xlu0 %1173, %v89
    %v1175 = vpop.permute.xlu0 %1174
    %1176 = vset.pattern.permute.xlu0 0
    %1177 = vperm.xlu0 %1176, %v90
    %v1178 = vpop.permute.xlu0 %1177
    %1179 = vset.pattern.permute.xlu0 0
    %1180 = vperm.xlu0 %1179, %v91
    %v1181 = vpop.permute.xlu0 %1180
    %1182 = vset.pattern.permute.xlu0 0
    %1183 = vperm.xlu0 %1182, %v92
    %v1184 = vpop.permute.xlu0 %1183
    %1185 = vset.pattern.permute.xlu0 0
    %1186 = vperm.xlu0 %1185, %v93
    %v1187 = vpop.permute.xlu0 %1186
    %1188 = vset.pattern.permute.xlu0 0
    %1189 = vperm.xlu0 %1188, %v94
    %v1190 = vpop.permute.xlu0 %1189
    %1191 = vset.pattern.permute.xlu0 0
    %1192 = vperm.xlu0 %1191, %v95
    %v1193 = vpop.permute.xlu0 %1192
    %1194 = vset.pattern.permute.xlu0 0
    %1195 = vperm.xlu0 %1194, %v96
    %v1196 = vpop.permute.xlu0 %1195
    %1197 = vset.pattern.permute.xlu0 0
    %1198 = vperm.xlu0 %1197, %v97
    %v1199 = vpop.permute.xlu0 %1198
    %1200 = vset.pattern.permute.xlu0 0
    %1201 = vperm.xlu0 %1200, %v98
    %v1202 = vpop.permute.xlu0 %1201
    %1203 = vset.pattern.permute.xlu0 0
    %1204 = vperm.xlu0 %1203, %v99
    %v1205 = vpop.permute.xlu0 %1204
    %1206 = vset.pattern.permute.xlu0 0
    %1207 = vperm.xlu0 %1206, %v100
    %v1208 = vpop.permute.xlu0 %1207
    %1209 = vset.pattern.permute.xlu0 0
    %1210 = vperm.xlu0 %1209, %v101
    %v1211 = vpop.permute.xlu0 %1210
    %1212 = vset.pattern.permute.xlu0 0
    %1213 = vperm.xlu0 %1212, %v102
    %v1214 = vpop.permute.xlu0 %1213
    %1215 = vset.pattern.permute.xlu0 0
    %1216 = vperm.xlu0 %1215, %v103
    %v1217 = vpop.permute.xlu0 %1216
    %1218 = vset.pattern.permute.xlu0 0
    %1219 = vperm.xlu0 %1218, %v104
    %v1220 = vpop.permute.xlu0 %1219
    %1221 = vset.pattern.permute.xlu0 0
    %1222 = vperm.xlu0 %1221, %v105
    %v1223 = vpop.permute.xlu0 %1222
    %1224 = vset.pattern.permute.xlu0 0
    %1225 = vperm.xlu0 %1224, %v106
    %v1226 = vpop.permute.xlu0 %1225
    %1227 = vset.pattern.permute.xlu0 0
    %1228 = vperm.xlu0 %1227, %v107
    %v1229 = vpop.permute.xlu0 %1228
    %1230 = vset.pattern.permute.xlu0 0
    %1231 = vperm.xlu0 %1230, %v108
    %v1232 = vpop.permute.xlu0 %1231
    %1233 = vset.pattern.permute.xlu0 0
    %1234 = vperm.xlu0 %1233, %v109
    %v1235 = vpop.permute.xlu0 %1234
    %vm1236 = vcmp.eq.s32.totalorder %v1137, %v1142
    %vm1237 = vcmp.eq.s32.totalorder %v1138, %v1142
    %vm1238 = vcmp.eq.s32.totalorder %v1139, %v1142
    %vm1239 = vcmp.eq.s32.totalorder %v1137, %v1145
    %vm1240 = vcmp.eq.s32.totalorder %v1138, %v1145
    %vm1241 = vcmp.eq.s32.totalorder %v1139, %v1145
    %vm1242 = vcmp.eq.s32.totalorder %v1137, %v1148
    %vm1243 = vcmp.eq.s32.totalorder %v1138, %v1148
    %vm1244 = vcmp.eq.s32.totalorder %v1139, %v1148
    %vm1245 = vcmp.eq.s32.totalorder %v1137, %v1151
    %vm1246 = vcmp.eq.s32.totalorder %v1138, %v1151
    %vm1247 = vcmp.eq.s32.totalorder %v1139, %v1151
    %vm1248 = vcmp.eq.s32.totalorder %v1137, %v1154
    %vm1249 = vcmp.eq.s32.totalorder %v1138, %v1154
    %vm1250 = vcmp.eq.s32.totalorder %v1139, %v1154
    %vm1251 = vcmp.eq.s32.totalorder %v1137, %v1157
    %vm1252 = vcmp.eq.s32.totalorder %v1138, %v1157
    %vm1253 = vcmp.eq.s32.totalorder %v1139, %v1157
    %vm1254 = vcmp.eq.s32.totalorder %v1137, %v1160
    %vm1255 = vcmp.eq.s32.totalorder %v1138, %v1160
    %vm1256 = vcmp.eq.s32.totalorder %v1139, %v1160
    %vm1257 = vcmp.eq.s32.totalorder %v1137, %v1163
    %vm1258 = vcmp.eq.s32.totalorder %v1138, %v1163
    %vm1259 = vcmp.eq.s32.totalorder %v1139, %v1163
    %vm1260 = vcmp.eq.s32.totalorder %v1137, %v1166
    %vm1261 = vcmp.eq.s32.totalorder %v1138, %v1166
    %vm1262 = vcmp.eq.s32.totalorder %v1139, %v1166
    %vm1263 = vcmp.eq.s32.totalorder %v1137, %v1169
    %vm1264 = vcmp.eq.s32.totalorder %v1138, %v1169
    %vm1265 = vcmp.eq.s32.totalorder %v1139, %v1169
    %vm1266 = vcmp.eq.s32.totalorder %v1137, %v1172
    %vm1267 = vcmp.eq.s32.totalorder %v1138, %v1172
    %vm1268 = vcmp.eq.s32.totalorder %v1139, %v1172
    %vm1269 = vcmp.eq.s32.totalorder %v1137, %v1175
    %vm1270 = vcmp.eq.s32.totalorder %v1138, %v1175
    %vm1271 = vcmp.eq.s32.totalorder %v1139, %v1175
    %vm1272 = vcmp.eq.s32.totalorder %v1137, %v1178
    %vm1273 = vcmp.eq.s32.totalorder %v1138, %v1178
    %vm1274 = vcmp.eq.s32.totalorder %v1139, %v1178
    %vm1275 = vcmp.eq.s32.totalorder %v1137, %v1181
    %vm1276 = vcmp.eq.s32.totalorder %v1138, %v1181
    %vm1277 = vcmp.eq.s32.totalorder %v1139, %v1181
    %vm1278 = vcmp.eq.s32.totalorder %v1137, %v1184
    %vm1279 = vcmp.eq.s32.totalorder %v1138, %v1184
    %vm1280 = vcmp.eq.s32.totalorder %v1139, %v1184
    %vm1281 = vcmp.eq.s32.totalorder %v1137, %v1187
    %vm1282 = vcmp.eq.s32.totalorder %v1138, %v1187
    %vm1283 = vcmp.eq.s32.totalorder %v1139, %v1187
    %vm1284 = vcmp.eq.s32.totalorder %v1137, %v1190
    %vm1285 = vcmp.eq.s32.totalorder %v1138, %v1190
    %vm1286 = vcmp.eq.s32.totalorder %v1139, %v1190
    %vm1287 = vcmp.eq.s32.totalorder %v1137, %v1193
    %vm1288 = vcmp.eq.s32.totalorder %v1138, %v1193
    %vm1289 = vcmp.eq.s32.totalorder %v1139, %v1193
    %vm1290 = vcmp.eq.s32.totalorder %v1137, %v1196
    %vm1291 = vcmp.eq.s32.totalorder %v1138, %v1196
    %vm1292 = vcmp.eq.s32.totalorder %v1139, %v1196
    %vm1293 = vcmp.eq.s32.totalorder %v1137, %v1199
    %vm1294 = vcmp.eq.s32.totalorder %v1138, %v1199
    %vm1295 = vcmp.eq.s32.totalorder %v1139, %v1199
    %vm1296 = vcmp.eq.s32.totalorder %v1137, %v1202
    %vm1297 = vcmp.eq.s32.totalorder %v1138, %v1202
    %vm1298 = vcmp.eq.s32.totalorder %v1139, %v1202
    %vm1299 = vcmp.eq.s32.totalorder %v1137, %v1205
    %vm1300 = vcmp.eq.s32.totalorder %v1138, %v1205
    %vm1301 = vcmp.eq.s32.totalorder %v1139, %v1205
    %vm1302 = vcmp.eq.s32.totalorder %v1137, %v1208
    %vm1303 = vcmp.eq.s32.totalorder %v1138, %v1208
    %vm1304 = vcmp.eq.s32.totalorder %v1139, %v1208
    %vm1305 = vcmp.eq.s32.totalorder %v1137, %v1211
    %vm1306 = vcmp.eq.s32.totalorder %v1138, %v1211
    %vm1307 = vcmp.eq.s32.totalorder %v1139, %v1211
    %vm1308 = vcmp.eq.s32.totalorder %v1137, %v1214
    %vm1309 = vcmp.eq.s32.totalorder %v1138, %v1214
    %vm1310 = vcmp.eq.s32.totalorder %v1139, %v1214
    %vm1311 = vcmp.eq.s32.totalorder %v1137, %v1217
    %vm1312 = vcmp.eq.s32.totalorder %v1138, %v1217
    %vm1313 = vcmp.eq.s32.totalorder %v1139, %v1217
    %vm1314 = vcmp.eq.s32.totalorder %v1137, %v1220
    %vm1315 = vcmp.eq.s32.totalorder %v1138, %v1220
    %vm1316 = vcmp.eq.s32.totalorder %v1139, %v1220
    %vm1317 = vcmp.eq.s32.totalorder %v1137, %v1223
    %vm1318 = vcmp.eq.s32.totalorder %v1138, %v1223
    %vm1319 = vcmp.eq.s32.totalorder %v1139, %v1223
    %vm1320 = vcmp.eq.s32.totalorder %v1137, %v1226
    %vm1321 = vcmp.eq.s32.totalorder %v1138, %v1226
    %vm1322 = vcmp.eq.s32.totalorder %v1139, %v1226
    %vm1323 = vcmp.eq.s32.totalorder %v1137, %v1229
    %vm1324 = vcmp.eq.s32.totalorder %v1138, %v1229
    %vm1325 = vcmp.eq.s32.totalorder %v1139, %v1229
    %vm1326 = vcmp.eq.s32.totalorder %v1137, %v1232
    %vm1327 = vcmp.eq.s32.totalorder %v1138, %v1232
    %vm1328 = vcmp.eq.s32.totalorder %v1139, %v1232
    %vm1329 = vcmp.eq.s32.totalorder %v1137, %v1235
    %vm1330 = vcmp.eq.s32.totalorder %v1138, %v1235
    %vm1331 = vcmp.eq.s32.totalorder %v1139, %v1235
    %vm1332 = vmpackc.low %vm1237, %vm1236
    %vm1333 = vmpackc.low %vm1238, %vm1238
    %vm1334 = vmpackc.low %vm1240, %vm1239
    %vm1335 = vmpackc.low %vm1241, %vm1241
    %vm1336 = vmpackc.low %vm1243, %vm1242
    %vm1337 = vmpackc.low %vm1244, %vm1244
    %vm1338 = vmpackc.low %vm1246, %vm1245
    %vm1339 = vmpackc.low %vm1247, %vm1247
    %vm1340 = vmpackc.low %vm1249, %vm1248
    %vm1341 = vmpackc.low %vm1250, %vm1250
    %vm1342 = vmpackc.low %vm1252, %vm1251
    %vm1343 = vmpackc.low %vm1253, %vm1253
    %vm1344 = vmpackc.low %vm1255, %vm1254
    %vm1345 = vmpackc.low %vm1256, %vm1256
    %vm1346 = vmpackc.low %vm1258, %vm1257
    %vm1347 = vmpackc.low %vm1259, %vm1259
    %vm1348 = vmpackc.low %vm1261, %vm1260
    %vm1349 = vmpackc.low %vm1262, %vm1262
    %vm1350 = vmpackc.low %vm1264, %vm1263
    %vm1351 = vmpackc.low %vm1265, %vm1265
    %vm1352 = vmpackc.low %vm1267, %vm1266
    %vm1353 = vmpackc.low %vm1268, %vm1268
    %vm1354 = vmpackc.low %vm1270, %vm1269
    %vm1355 = vmpackc.low %vm1271, %vm1271
    %vm1356 = vmpackc.low %vm1273, %vm1272
    %vm1357 = vmpackc.low %vm1274, %vm1274
    %vm1358 = vmpackc.low %vm1276, %vm1275
    %vm1359 = vmpackc.low %vm1277, %vm1277
    %vm1360 = vmpackc.low %vm1279, %vm1278
    %vm1361 = vmpackc.low %vm1280, %vm1280
    %vm1362 = vmpackc.low %vm1282, %vm1281
    %vm1363 = vmpackc.low %vm1283, %vm1283
    %vm1364 = vmpackc.low %vm1285, %vm1284
    %vm1365 = vmpackc.low %vm1286, %vm1286
    %vm1366 = vmpackc.low %vm1288, %vm1287
    %vm1367 = vmpackc.low %vm1289, %vm1289
    %vm1368 = vmpackc.low %vm1291, %vm1290
    %vm1369 = vmpackc.low %vm1292, %vm1292
    %vm1370 = vmpackc.low %vm1294, %vm1293
    %vm1371 = vmpackc.low %vm1295, %vm1295
    %vm1372 = vmpackc.low %vm1297, %vm1296
    %vm1373 = vmpackc.low %vm1298, %vm1298
    %vm1374 = vmpackc.low %vm1300, %vm1299
    %vm1375 = vmpackc.low %vm1301, %vm1301
    %vm1376 = vmpackc.low %vm1303, %vm1302
    %vm1377 = vmpackc.low %vm1304, %vm1304
    %vm1378 = vmpackc.low %vm1306, %vm1305
    %vm1379 = vmpackc.low %vm1307, %vm1307
    %vm1380 = vmpackc.low %vm1309, %vm1308
    %vm1381 = vmpackc.low %vm1310, %vm1310
    %vm1382 = vmpackc.low %vm1312, %vm1311
    %vm1383 = vmpackc.low %vm1313, %vm1313
    %vm1384 = vmpackc.low %vm1315, %vm1314
    %vm1385 = vmpackc.low %vm1316, %vm1316
    %vm1386 = vmpackc.low %vm1318, %vm1317
    %vm1387 = vmpackc.low %vm1319, %vm1319
    %vm1388 = vmpackc.low %vm1321, %vm1320
    %vm1389 = vmpackc.low %vm1322, %vm1322
    %vm1390 = vmpackc.low %vm1324, %vm1323
    %vm1391 = vmpackc.low %vm1325, %vm1325
    %vm1392 = vmpackc.low %vm1327, %vm1326
    %vm1393 = vmpackc.low %vm1328, %vm1328
    %vm1394 = vmpackc.low %vm1330, %vm1329
    %vm1395 = vmpackc.low %vm1331, %vm1331
    %v1396 = vsel %vm1332, %v14, 0
    %v1397 = vsel %vm1333, %v15, 0
    %v1398 = vsel %vm1334, %v16, 0
    %v1399 = vsel %vm1335, %v17, 0
    %v1400 = vsel %vm1336, %v18, 0
    %v1401 = vsel %vm1337, %v19, 0
    %v1402 = vsel %vm1338, %v20, 0
    %v1403 = vsel %vm1339, %v21, 0
    %v1404 = vsel %vm1340, %v22, 0
    %v1405 = vsel %vm1341, %v23, 0
    %v1406 = vsel %vm1342, %v24, 0
    %v1407 = vsel %vm1343, %v25, 0
    %v1408 = vsel %vm1344, %v26, 0
    %v1409 = vsel %vm1345, %v27, 0
    %v1410 = vsel %vm1346, %v28, 0
    %v1411 = vsel %vm1347, %v29, 0
    %v1412 = vsel %vm1348, %v30, 0
    %v1413 = vsel %vm1349, %v31, 0
    %v1414 = vsel %vm1350, %v32, 0
    %v1415 = vsel %vm1351, %v33, 0
    %v1416 = vsel %vm1352, %v34, 0
    %v1417 = vsel %vm1353, %v35, 0
    %v1418 = vsel %vm1354, %v36, 0
    %v1419 = vsel %vm1355, %v37, 0
    %v1420 = vsel %vm1356, %v38, 0
    %v1421 = vsel %vm1357, %v39, 0
    %v1422 = vsel %vm1358, %v40, 0
    %v1423 = vsel %vm1359, %v41, 0
    %v1424 = vsel %vm1360, %v42, 0
    %v1425 = vsel %vm1361, %v43, 0
    %v1426 = vsel %vm1362, %v44, 0
    %v1427 = vsel %vm1363, %v45, 0
    %v1428 = vsel %vm1364, %v46, 0
    %v1429 = vsel %vm1365, %v47, 0
    %v1430 = vsel %vm1366, %v48, 0
    %v1431 = vsel %vm1367, %v49, 0
    %v1432 = vsel %vm1368, %v50, 0
    %v1433 = vsel %vm1369, %v51, 0
    %v1434 = vsel %vm1370, %v52, 0
    %v1435 = vsel %vm1371, %v53, 0
    %v1436 = vsel %vm1372, %v54, 0
    %v1437 = vsel %vm1373, %v55, 0
    %v1438 = vsel %vm1374, %v56, 0
    %v1439 = vsel %vm1375, %v57, 0
    %v1440 = vsel %vm1376, %v58, 0
    %v1441 = vsel %vm1377, %v59, 0
    %v1442 = vsel %vm1378, %v60, 0
    %v1443 = vsel %vm1379, %v61, 0
    %v1444 = vsel %vm1380, %v62, 0
    %v1445 = vsel %vm1381, %v63, 0
    %v1446 = vsel %vm1382, %v64, 0
    %v1447 = vsel %vm1383, %v65, 0
    %v1448 = vsel %vm1384, %v66, 0
    %v1449 = vsel %vm1385, %v67, 0
    %v1450 = vsel %vm1386, %v68, 0
    %v1451 = vsel %vm1387, %v69, 0
    %v1452 = vsel %vm1388, %v70, 0
    %v1453 = vsel %vm1389, %v71, 0
    %v1454 = vsel %vm1390, %v72, 0
    %v1455 = vsel %vm1391, %v73, 0
    %v1456 = vsel %vm1392, %v74, 0
    %v1457 = vsel %vm1393, %v75, 0
    %v1458 = vsel %vm1394, %v76, 0
    %v1459 = vsel %vm1395, %v77, 0
    %v1460 = vunpack.c.l.bf16 %v1396
    %v1461 = vunpack.c.h.bf16 %v1396
    %v1462 = vunpack.c.l.bf16 %v1397
    %v1463 = vunpack.c.l.bf16 %v1398
    %v1464 = vunpack.c.h.bf16 %v1398
    %v1465 = vunpack.c.l.bf16 %v1399
    %v1466 = vunpack.c.l.bf16 %v1400
    %v1467 = vunpack.c.h.bf16 %v1400
    %v1468 = vunpack.c.l.bf16 %v1401
    %v1469 = vunpack.c.l.bf16 %v1402
    %v1470 = vunpack.c.h.bf16 %v1402
    %v1471 = vunpack.c.l.bf16 %v1403
    %v1472 = vunpack.c.l.bf16 %v1404
    %v1473 = vunpack.c.h.bf16 %v1404
    %v1474 = vunpack.c.l.bf16 %v1405
    %v1475 = vunpack.c.l.bf16 %v1406
    %v1476 = vunpack.c.h.bf16 %v1406
    %v1477 = vunpack.c.l.bf16 %v1407
    %v1478 = vunpack.c.l.bf16 %v1408
    %v1479 = vunpack.c.h.bf16 %v1408
    %v1480 = vunpack.c.l.bf16 %v1409
    %v1481 = vunpack.c.l.bf16 %v1410
    %v1482 = vunpack.c.h.bf16 %v1410
    %v1483 = vunpack.c.l.bf16 %v1411
    %v1484 = vunpack.c.l.bf16 %v1412
    %v1485 = vunpack.c.h.bf16 %v1412
    %v1486 = vunpack.c.l.bf16 %v1413
    %v1487 = vunpack.c.l.bf16 %v1414
    %v1488 = vunpack.c.h.bf16 %v1414
    %v1489 = vunpack.c.l.bf16 %v1415
    %v1490 = vunpack.c.l.bf16 %v1416
    %v1491 = vunpack.c.h.bf16 %v1416
    %v1492 = vunpack.c.l.bf16 %v1417
    %v1493 = vunpack.c.l.bf16 %v1418
    %v1494 = vunpack.c.h.bf16 %v1418
    %v1495 = vunpack.c.l.bf16 %v1419
    %v1496 = vunpack.c.l.bf16 %v1420
    %v1497 = vunpack.c.h.bf16 %v1420
    %v1498 = vunpack.c.l.bf16 %v1421
    %v1499 = vunpack.c.l.bf16 %v1422
    %v1500 = vunpack.c.h.bf16 %v1422
    %v1501 = vunpack.c.l.bf16 %v1423
    %v1502 = vunpack.c.l.bf16 %v1424
    %v1503 = vunpack.c.h.bf16 %v1424
    %v1504 = vunpack.c.l.bf16 %v1425
    %v1505 = vunpack.c.l.bf16 %v1426
    %v1506 = vunpack.c.h.bf16 %v1426
    %v1507 = vunpack.c.l.bf16 %v1427
    %v1508 = vunpack.c.l.bf16 %v1428
    %v1509 = vunpack.c.h.bf16 %v1428
    %v1510 = vunpack.c.l.bf16 %v1429
    %v1511 = vunpack.c.l.bf16 %v1430
    %v1512 = vunpack.c.h.bf16 %v1430
    %v1513 = vunpack.c.l.bf16 %v1431
    %v1514 = vunpack.c.l.bf16 %v1432
    %v1515 = vunpack.c.h.bf16 %v1432
    %v1516 = vunpack.c.l.bf16 %v1433
    %v1517 = vunpack.c.l.bf16 %v1434
    %v1518 = vunpack.c.h.bf16 %v1434
    %v1519 = vunpack.c.l.bf16 %v1435
    %v1520 = vunpack.c.l.bf16 %v1436
    %v1521 = vunpack.c.h.bf16 %v1436
    %v1522 = vunpack.c.l.bf16 %v1437
    %v1523 = vunpack.c.l.bf16 %v1438
    %v1524 = vunpack.c.h.bf16 %v1438
    %v1525 = vunpack.c.l.bf16 %v1439
    %v1526 = vunpack.c.l.bf16 %v1440
    %v1527 = vunpack.c.h.bf16 %v1440
    %v1528 = vunpack.c.l.bf16 %v1441
    %v1529 = vunpack.c.l.bf16 %v1442
    %v1530 = vunpack.c.h.bf16 %v1442
    %v1531 = vunpack.c.l.bf16 %v1443
    %v1532 = vunpack.c.l.bf16 %v1444
    %v1533 = vunpack.c.h.bf16 %v1444
    %v1534 = vunpack.c.l.bf16 %v1445
    %v1535 = vunpack.c.l.bf16 %v1446
    %v1536 = vunpack.c.h.bf16 %v1446
    %v1537 = vunpack.c.l.bf16 %v1447
    %v1538 = vunpack.c.l.bf16 %v1448
    %v1539 = vunpack.c.h.bf16 %v1448
    %v1540 = vunpack.c.l.bf16 %v1449
    %v1541 = vunpack.c.l.bf16 %v1450
    %v1542 = vunpack.c.h.bf16 %v1450
    %v1543 = vunpack.c.l.bf16 %v1451
    %v1544 = vunpack.c.l.bf16 %v1452
    %v1545 = vunpack.c.h.bf16 %v1452
    %v1546 = vunpack.c.l.bf16 %v1453
    %v1547 = vunpack.c.l.bf16 %v1454
    %v1548 = vunpack.c.h.bf16 %v1454
    %v1549 = vunpack.c.l.bf16 %v1455
    %v1550 = vunpack.c.l.bf16 %v1456
    %v1551 = vunpack.c.h.bf16 %v1456
    %v1552 = vunpack.c.l.bf16 %v1457
    %v1553 = vunpack.c.l.bf16 %v1458
    %v1554 = vunpack.c.h.bf16 %v1458
    %v1555 = vunpack.c.l.bf16 %v1459
    %v1556 = vadd.f32 %v1460, %v1461
    %v1557 = vsel %vm351, %v1462, 0.0
    %v1558 = vadd.f32 %v1556, %v1557
    %1559 = vadd.xlane.f32.xlu0 %v1558
    %v1560 = vpop.xlane.xlu0 %1559
    %v1561 = vadd.f32 %v1463, %v1464
    %v1562 = vsel %vm351, %v1465, 0.0
    %v1563 = vadd.f32 %v1561, %v1562
    %1564 = vadd.xlane.f32.xlu0 %v1563
    %v1565 = vpop.xlane.xlu0 %1564
    %v1566 = vadd.f32 %v1466, %v1467
    %v1567 = vsel %vm351, %v1468, 0.0
    %v1568 = vadd.f32 %v1566, %v1567
    %1569 = vadd.xlane.f32.xlu0 %v1568
    %v1570 = vpop.xlane.xlu0 %1569
    %v1571 = vadd.f32 %v1469, %v1470
    %v1572 = vsel %vm351, %v1471, 0.0
    %v1573 = vadd.f32 %v1571, %v1572
    %1574 = vadd.xlane.f32.xlu0 %v1573
    %v1575 = vpop.xlane.xlu0 %1574
    %v1576 = vadd.f32 %v1472, %v1473
    %v1577 = vsel %vm351, %v1474, 0.0
    %v1578 = vadd.f32 %v1576, %v1577
    %1579 = vadd.xlane.f32.xlu0 %v1578
    %v1580 = vpop.xlane.xlu0 %1579
    %v1581 = vadd.f32 %v1475, %v1476
    %v1582 = vsel %vm351, %v1477, 0.0
    %v1583 = vadd.f32 %v1581, %v1582
    %1584 = vadd.xlane.f32.xlu0 %v1583
    %v1585 = vpop.xlane.xlu0 %1584
    %v1586 = vadd.f32 %v1478, %v1479
    %v1587 = vsel %vm351, %v1480, 0.0
    %v1588 = vadd.f32 %v1586, %v1587
    %1589 = vadd.xlane.f32.xlu0 %v1588
    %v1590 = vpop.xlane.xlu0 %1589
    %v1591 = vadd.f32 %v1481, %v1482
    %v1592 = vsel %vm351, %v1483, 0.0
    %v1593 = vadd.f32 %v1591, %v1592
    %1594 = vadd.xlane.f32.xlu0 %v1593
    %v1595 = vpop.xlane.xlu0 %1594
    %v1596 = vadd.f32 %v1484, %v1485
    %v1597 = vsel %vm351, %v1486, 0.0
    %v1598 = vadd.f32 %v1596, %v1597
    %1599 = vadd.xlane.f32.xlu0 %v1598
    %v1600 = vpop.xlane.xlu0 %1599
    %v1601 = vadd.f32 %v1487, %v1488
    %v1602 = vsel %vm351, %v1489, 0.0
    %v1603 = vadd.f32 %v1601, %v1602
    %1604 = vadd.xlane.f32.xlu0 %v1603
    %v1605 = vpop.xlane.xlu0 %1604
    %v1606 = vadd.f32 %v1490, %v1491
    %v1607 = vsel %vm351, %v1492, 0.0
    %v1608 = vadd.f32 %v1606, %v1607
    %1609 = vadd.xlane.f32.xlu0 %v1608
    %v1610 = vpop.xlane.xlu0 %1609
    %v1611 = vadd.f32 %v1493, %v1494
    %v1612 = vsel %vm351, %v1495, 0.0
    %v1613 = vadd.f32 %v1611, %v1612
    %1614 = vadd.xlane.f32.xlu0 %v1613
    %v1615 = vpop.xlane.xlu0 %1614
    %v1616 = vadd.f32 %v1496, %v1497
    %v1617 = vsel %vm351, %v1498, 0.0
    %v1618 = vadd.f32 %v1616, %v1617
    %1619 = vadd.xlane.f32.xlu0 %v1618
    %v1620 = vpop.xlane.xlu0 %1619
    %v1621 = vadd.f32 %v1499, %v1500
    %v1622 = vsel %vm351, %v1501, 0.0
    %v1623 = vadd.f32 %v1621, %v1622
    %1624 = vadd.xlane.f32.xlu0 %v1623
    %v1625 = vpop.xlane.xlu0 %1624
    %v1626 = vadd.f32 %v1502, %v1503
    %v1627 = vsel %vm351, %v1504, 0.0
    %v1628 = vadd.f32 %v1626, %v1627
    %1629 = vadd.xlane.f32.xlu0 %v1628
    %v1630 = vpop.xlane.xlu0 %1629
    %v1631 = vadd.f32 %v1505, %v1506
    %v1632 = vsel %vm351, %v1507, 0.0
    %v1633 = vadd.f32 %v1631, %v1632
    %1634 = vadd.xlane.f32.xlu0 %v1633
    %v1635 = vpop.xlane.xlu0 %1634
    %v1636 = vadd.f32 %v1508, %v1509
    %v1637 = vsel %vm351, %v1510, 0.0
    %v1638 = vadd.f32 %v1636, %v1637
    %1639 = vadd.xlane.f32.xlu0 %v1638
    %v1640 = vpop.xlane.xlu0 %1639
    %v1641 = vadd.f32 %v1511, %v1512
    %v1642 = vsel %vm351, %v1513, 0.0
    %v1643 = vadd.f32 %v1641, %v1642
    %1644 = vadd.xlane.f32.xlu0 %v1643
    %v1645 = vpop.xlane.xlu0 %1644
    %v1646 = vadd.f32 %v1514, %v1515
    %v1647 = vsel %vm351, %v1516, 0.0
    %v1648 = vadd.f32 %v1646, %v1647
    %1649 = vadd.xlane.f32.xlu0 %v1648
    %v1650 = vpop.xlane.xlu0 %1649
    %v1651 = vadd.f32 %v1517, %v1518
    %v1652 = vsel %vm351, %v1519, 0.0
    %v1653 = vadd.f32 %v1651, %v1652
    %1654 = vadd.xlane.f32.xlu0 %v1653
    %v1655 = vpop.xlane.xlu0 %1654
    %v1656 = vadd.f32 %v1520, %v1521
    %v1657 = vsel %vm351, %v1522, 0.0
    %v1658 = vadd.f32 %v1656, %v1657
    %1659 = vadd.xlane.f32.xlu0 %v1658
    %v1660 = vpop.xlane.xlu0 %1659
    %v1661 = vadd.f32 %v1523, %v1524
    %v1662 = vsel %vm351, %v1525, 0.0
    %v1663 = vadd.f32 %v1661, %v1662
    %1664 = vadd.xlane.f32.xlu0 %v1663
    %v1665 = vpop.xlane.xlu0 %1664
    %v1666 = vadd.f32 %v1526, %v1527
    %v1667 = vsel %vm351, %v1528, 0.0
    %v1668 = vadd.f32 %v1666, %v1667
    %1669 = vadd.xlane.f32.xlu0 %v1668
    %v1670 = vpop.xlane.xlu0 %1669
    %v1671 = vadd.f32 %v1529, %v1530
    %v1672 = vsel %vm351, %v1531, 0.0
    %v1673 = vadd.f32 %v1671, %v1672
    %1674 = vadd.xlane.f32.xlu0 %v1673
    %v1675 = vpop.xlane.xlu0 %1674
    %v1676 = vadd.f32 %v1532, %v1533
    %v1677 = vsel %vm351, %v1534, 0.0
    %v1678 = vadd.f32 %v1676, %v1677
    %1679 = vadd.xlane.f32.xlu0 %v1678
    %v1680 = vpop.xlane.xlu0 %1679
    %v1681 = vadd.f32 %v1535, %v1536
    %v1682 = vsel %vm351, %v1537, 0.0
    %v1683 = vadd.f32 %v1681, %v1682
    %1684 = vadd.xlane.f32.xlu0 %v1683
    %v1685 = vpop.xlane.xlu0 %1684
    %v1686 = vadd.f32 %v1538, %v1539
    %v1687 = vsel %vm351, %v1540, 0.0
    %v1688 = vadd.f32 %v1686, %v1687
    %1689 = vadd.xlane.f32.xlu0 %v1688
    %v1690 = vpop.xlane.xlu0 %1689
    %v1691 = vadd.f32 %v1541, %v1542
    %v1692 = vsel %vm351, %v1543, 0.0
    %v1693 = vadd.f32 %v1691, %v1692
    %1694 = vadd.xlane.f32.xlu0 %v1693
    %v1695 = vpop.xlane.xlu0 %1694
    %v1696 = vadd.f32 %v1544, %v1545
    %v1697 = vsel %vm351, %v1546, 0.0
    %v1698 = vadd.f32 %v1696, %v1697
    %1699 = vadd.xlane.f32.xlu0 %v1698
    %v1700 = vpop.xlane.xlu0 %1699
    %v1701 = vadd.f32 %v1547, %v1548
    %v1702 = vsel %vm351, %v1549, 0.0
    %v1703 = vadd.f32 %v1701, %v1702
    %1704 = vadd.xlane.f32.xlu0 %v1703
    %v1705 = vpop.xlane.xlu0 %1704
    %v1706 = vadd.f32 %v1550, %v1551
    %v1707 = vsel %vm351, %v1552, 0.0
    %v1708 = vadd.f32 %v1706, %v1707
    %1709 = vadd.xlane.f32.xlu0 %v1708
    %v1710 = vpop.xlane.xlu0 %1709
    %v1711 = vadd.f32 %v1553, %v1554
    %v1712 = vsel %vm351, %v1555, 0.0
    %v1713 = vadd.f32 %v1711, %v1712
    %1714 = vadd.xlane.f32.xlu0 %v1713
    %v1715 = vpop.xlane.xlu0 %1714
    %v1716 = vpack.c.bf16 %v1565, %v1560
    %v1717 = vpack.c.bf16 %v1575, %v1570
    %v1718 = vpack.c.bf16 %v1585, %v1580
    %v1719 = vpack.c.bf16 %v1595, %v1590
    %v1720 = vpack.c.bf16 %v1605, %v1600
    %v1721 = vpack.c.bf16 %v1615, %v1610
    %v1722 = vpack.c.bf16 %v1625, %v1620
    %v1723 = vpack.c.bf16 %v1635, %v1630
    %v1724 = vpack.c.bf16 %v1645, %v1640
    %v1725 = vpack.c.bf16 %v1655, %v1650
    %v1726 = vpack.c.bf16 %v1665, %v1660
    %v1727 = vpack.c.bf16 %v1675, %v1670
    %v1728 = vpack.c.bf16 %v1685, %v1680
    %v1729 = vpack.c.bf16 %v1695, %v1690
    %v1730 = vpack.c.bf16 %v1705, %v1700
    %v1731 = vpack.c.bf16 %v1715, %v1710
    %v1732 = vunpack.c.l.bf16 %v1716
    %v1733 = vunpack.c.h.bf16 %v1716
    %v1734 = vunpack.c.l.bf16 %v1717
    %v1735 = vunpack.c.h.bf16 %v1717
    %v1736 = vunpack.c.l.bf16 %v1718
    %v1737 = vunpack.c.h.bf16 %v1718
    %v1738 = vunpack.c.l.bf16 %v1719
    %v1739 = vunpack.c.h.bf16 %v1719
    %v1740 = vunpack.c.l.bf16 %v1720
    %v1741 = vunpack.c.h.bf16 %v1720
    %v1742 = vunpack.c.l.bf16 %v1721
    %v1743 = vunpack.c.h.bf16 %v1721
    %v1744 = vunpack.c.l.bf16 %v1722
    %v1745 = vunpack.c.h.bf16 %v1722
    %v1746 = vunpack.c.l.bf16 %v1723
    %v1747 = vunpack.c.h.bf16 %v1723
    %v1748 = vunpack.c.l.bf16 %v1724
    %v1749 = vunpack.c.h.bf16 %v1724
    %v1750 = vunpack.c.l.bf16 %v1725
    %v1751 = vunpack.c.h.bf16 %v1725
    %v1752 = vunpack.c.l.bf16 %v1726
    %v1753 = vunpack.c.h.bf16 %v1726
    %v1754 = vunpack.c.l.bf16 %v1727
    %v1755 = vunpack.c.h.bf16 %v1727
    %v1756 = vunpack.c.l.bf16 %v1728
    %v1757 = vunpack.c.h.bf16 %v1728
    %v1758 = vunpack.c.l.bf16 %v1729
    %v1759 = vunpack.c.h.bf16 %v1729
    %v1760 = vunpack.c.l.bf16 %v1730
    %v1761 = vunpack.c.h.bf16 %v1730
    %v1762 = vunpack.c.l.bf16 %v1731
    %v1763 = vunpack.c.h.bf16 %v1731
    %s1764 = smul.u32 0, 256
    %v1765 = vlaneseq
    %v1766 = vshrl.u32 %v1765, 7
    %v1767 = vadd.s32 %v1766, 8
    %v1768 = vadd.s32 %v1766, 16
    %v1769 = vadd.s32 %v1766, 24
    %v1770 = vadd.s32 %v1766, 32
    %v1771 = vadd.s32 %v1766, 40
    %v1772 = vadd.s32 %v1766, 48
    %v1773 = vadd.s32 %v1766, 56
    %v1774 = vadd.s32 %v1766, 64
    %v1775 = vadd.s32 %v1766, 72
    %v1776 = vadd.s32 %v1766, 80
    %v1777 = vadd.s32 %v1766, 88
    %v1778 = vadd.s32 %v1766, 96
    %v1779 = vadd.s32 %v1766, 104
    %v1780 = vadd.s32 %v1766, 112
    %v1781 = vadd.s32 %v1766, 120
    %v1782 = vadd.s32 %v1766, 128
    %v1783 = vadd.s32 %v1766, 136
    %v1784 = vadd.s32 %v1766, 144
    %v1785 = vadd.s32 %v1766, 152
    %v1786 = vadd.s32 %v1766, 160
    %v1787 = vadd.s32 %v1766, 168
    %v1788 = vadd.s32 %v1766, 176
    %v1789 = vadd.s32 %v1766, 184
    %v1790 = vadd.s32 %v1766, 192
    %v1791 = vadd.s32 %v1766, 200
    %v1792 = vadd.s32 %v1766, 208
    %v1793 = vadd.s32 %v1766, 216
    %v1794 = vadd.s32 %v1766, 224
    %v1795 = vadd.s32 %v1766, 232
    %v1796 = vadd.s32 %v1766, 240
    %v1797 = vadd.s32 %v1766, 248
    %v1798 = vstv %s1764
    %v1799 = vadd.s32 %v1798, %v1766
    %v1800 = vadd.s32 %v1798, %v1767
    %v1801 = vadd.s32 %v1798, %v1768
    %v1802 = vadd.s32 %v1798, %v1769
    %v1803 = vadd.s32 %v1798, %v1770
    %v1804 = vadd.s32 %v1798, %v1771
    %v1805 = vadd.s32 %v1798, %v1772
    %v1806 = vadd.s32 %v1798, %v1773
    %v1807 = vadd.s32 %v1798, %v1774
    %v1808 = vadd.s32 %v1798, %v1775
    %v1809 = vadd.s32 %v1798, %v1776
    %v1810 = vadd.s32 %v1798, %v1777
    %v1811 = vadd.s32 %v1798, %v1778
    %v1812 = vadd.s32 %v1798, %v1779
    %v1813 = vadd.s32 %v1798, %v1780
    %v1814 = vadd.s32 %v1798, %v1781
    %v1815 = vadd.s32 %v1798, %v1782
    %v1816 = vadd.s32 %v1798, %v1783
    %v1817 = vadd.s32 %v1798, %v1784
    %v1818 = vadd.s32 %v1798, %v1785
    %v1819 = vadd.s32 %v1798, %v1786
    %v1820 = vadd.s32 %v1798, %v1787
    %v1821 = vadd.s32 %v1798, %v1788
    %v1822 = vadd.s32 %v1798, %v1789
    %v1823 = vadd.s32 %v1798, %v1790
    %v1824 = vadd.s32 %v1798, %v1791
    %v1825 = vadd.s32 %v1798, %v1792
    %v1826 = vadd.s32 %v1798, %v1793
    %v1827 = vadd.s32 %v1798, %v1794
    %v1828 = vadd.s32 %v1798, %v1795
    %v1829 = vadd.s32 %v1798, %v1796
    %v1830 = vadd.s32 %v1798, %v1797
    %vm1831 = vcmp.ge.s32.totalorder %v78, 0
    %vm1832 = vcmp.ge.s32.totalorder %v79, 0
    %vm1833 = vcmp.ge.s32.totalorder %v80, 0
    %vm1834 = vcmp.ge.s32.totalorder %v81, 0
    %vm1835 = vcmp.ge.s32.totalorder %v82, 0
    %vm1836 = vcmp.ge.s32.totalorder %v83, 0
    %vm1837 = vcmp.ge.s32.totalorder %v84, 0
    %vm1838 = vcmp.ge.s32.totalorder %v85, 0
    %vm1839 = vcmp.ge.s32.totalorder %v86, 0
    %vm1840 = vcmp.ge.s32.totalorder %v87, 0
    %vm1841 = vcmp.ge.s32.totalorder %v88, 0
    %vm1842 = vcmp.ge.s32.totalorder %v89, 0
    %vm1843 = vcmp.ge.s32.totalorder %v90, 0
    %vm1844 = vcmp.ge.s32.totalorder %v91, 0
    %vm1845 = vcmp.ge.s32.totalorder %v92, 0
    %vm1846 = vcmp.ge.s32.totalorder %v93, 0
    %vm1847 = vcmp.ge.s32.totalorder %v94, 0
    %vm1848 = vcmp.ge.s32.totalorder %v95, 0
    %vm1849 = vcmp.ge.s32.totalorder %v96, 0
    %vm1850 = vcmp.ge.s32.totalorder %v97, 0
    %vm1851 = vcmp.ge.s32.totalorder %v98, 0
    %vm1852 = vcmp.ge.s32.totalorder %v99, 0
    %vm1853 = vcmp.ge.s32.totalorder %v100, 0
    %vm1854 = vcmp.ge.s32.totalorder %v101, 0
    %vm1855 = vcmp.ge.s32.totalorder %v102, 0
    %vm1856 = vcmp.ge.s32.totalorder %v103, 0
    %vm1857 = vcmp.ge.s32.totalorder %v104, 0
    %vm1858 = vcmp.ge.s32.totalorder %v105, 0
    %vm1859 = vcmp.ge.s32.totalorder %v106, 0
    %vm1860 = vcmp.ge.s32.totalorder %v107, 0
    %vm1861 = vcmp.ge.s32.totalorder %v108, 0
    %vm1862 = vcmp.ge.s32.totalorder %v109, 0
    %vm1863 = vcmp.lt.s32.totalorder %v1799, 256
    %vm1864 = vcmp.lt.s32.totalorder %v1800, 256
    %vm1865 = vcmp.lt.s32.totalorder %v1801, 256
    %vm1866 = vcmp.lt.s32.totalorder %v1802, 256
    %vm1867 = vcmp.lt.s32.totalorder %v1803, 256
    %vm1868 = vcmp.lt.s32.totalorder %v1804, 256
    %vm1869 = vcmp.lt.s32.totalorder %v1805, 256
    %vm1870 = vcmp.lt.s32.totalorder %v1806, 256
    %vm1871 = vcmp.lt.s32.totalorder %v1807, 256
    %vm1872 = vcmp.lt.s32.totalorder %v1808, 256
    %vm1873 = vcmp.lt.s32.totalorder %v1809, 256
    %vm1874 = vcmp.lt.s32.totalorder %v1810, 256
    %vm1875 = vcmp.lt.s32.totalorder %v1811, 256
    %vm1876 = vcmp.lt.s32.totalorder %v1812, 256
    %vm1877 = vcmp.lt.s32.totalorder %v1813, 256
    %vm1878 = vcmp.lt.s32.totalorder %v1814, 256
    %vm1879 = vcmp.lt.s32.totalorder %v1815, 256
    %vm1880 = vcmp.lt.s32.totalorder %v1816, 256
    %vm1881 = vcmp.lt.s32.totalorder %v1817, 256
    %vm1882 = vcmp.lt.s32.totalorder %v1818, 256
    %vm1883 = vcmp.lt.s32.totalorder %v1819, 256
    %vm1884 = vcmp.lt.s32.totalorder %v1820, 256
    %vm1885 = vcmp.lt.s32.totalorder %v1821, 256
    %vm1886 = vcmp.lt.s32.totalorder %v1822, 256
    %vm1887 = vcmp.lt.s32.totalorder %v1823, 256
    %vm1888 = vcmp.lt.s32.totalorder %v1824, 256
    %vm1889 = vcmp.lt.s32.totalorder %v1825, 256
    %vm1890 = vcmp.lt.s32.totalorder %v1826, 256
    %vm1891 = vcmp.lt.s32.totalorder %v1827, 256
    %vm1892 = vcmp.lt.s32.totalorder %v1828, 256
    %vm1893 = vcmp.lt.s32.totalorder %v1829, 256
    %vm1894 = vcmp.lt.s32.totalorder %v1830, 256
    %vm1895 = vmand %vm1831, %vm1863
    %vm1896 = vmand %vm1832, %vm1864
    %vm1897 = vmand %vm1833, %vm1865
    %vm1898 = vmand %vm1834, %vm1866
    %vm1899 = vmand %vm1835, %vm1867
    %vm1900 = vmand %vm1836, %vm1868
    %vm1901 = vmand %vm1837, %vm1869
    %vm1902 = vmand %vm1838, %vm1870
    %vm1903 = vmand %vm1839, %vm1871
    %vm1904 = vmand %vm1840, %vm1872
    %vm1905 = vmand %vm1841, %vm1873
    %vm1906 = vmand %vm1842, %vm1874
    %vm1907 = vmand %vm1843, %vm1875
    %vm1908 = vmand %vm1844, %vm1876
    %vm1909 = vmand %vm1845, %vm1877
    %vm1910 = vmand %vm1846, %vm1878
    %vm1911 = vmand %vm1847, %vm1879
    %vm1912 = vmand %vm1848, %vm1880
    %vm1913 = vmand %vm1849, %vm1881
    %vm1914 = vmand %vm1850, %vm1882
    %vm1915 = vmand %vm1851, %vm1883
    %vm1916 = vmand %vm1852, %vm1884
    %vm1917 = vmand %vm1853, %vm1885
    %vm1918 = vmand %vm1854, %vm1886
    %vm1919 = vmand %vm1855, %vm1887
    %vm1920 = vmand %vm1856, %vm1888
    %vm1921 = vmand %vm1857, %vm1889
    %vm1922 = vmand %vm1858, %vm1890
    %vm1923 = vmand %vm1859, %vm1891
    %vm1924 = vmand %vm1860, %vm1892
    %vm1925 = vmand %vm1861, %vm1893
    %vm1926 = vmand %vm1862, %vm1894
    %v1927 = vsub.f32 %v1104, %v1732
    %v1928 = vsub.f32 %v1105, %v1733
    %v1929 = vsub.f32 %v1106, %v1734
    %v1930 = vsub.f32 %v1107, %v1735
    %v1931 = vsub.f32 %v1108, %v1736
    %v1932 = vsub.f32 %v1109, %v1737
    %v1933 = vsub.f32 %v1110, %v1738
    %v1934 = vsub.f32 %v1111, %v1739
    %v1935 = vsub.f32 %v1112, %v1740
    %v1936 = vsub.f32 %v1113, %v1741
    %v1937 = vsub.f32 %v1114, %v1742
    %v1938 = vsub.f32 %v1115, %v1743
    %v1939 = vsub.f32 %v1116, %v1744
    %v1940 = vsub.f32 %v1117, %v1745
    %v1941 = vsub.f32 %v1118, %v1746
    %v1942 = vsub.f32 %v1119, %v1747
    %v1943 = vsub.f32 %v1120, %v1748
    %v1944 = vsub.f32 %v1121, %v1749
    %v1945 = vsub.f32 %v1122, %v1750
    %v1946 = vsub.f32 %v1123, %v1751
    %v1947 = vsub.f32 %v1124, %v1752
    %v1948 = vsub.f32 %v1125, %v1753
    %v1949 = vsub.f32 %v1126, %v1754
    %v1950 = vsub.f32 %v1127, %v1755
    %v1951 = vsub.f32 %v1128, %v1756
    %v1952 = vsub.f32 %v1129, %v1757
    %v1953 = vsub.f32 %v1130, %v1758
    %v1954 = vsub.f32 %v1131, %v1759
    %v1955 = vsub.f32 %v1132, %v1760
    %v1956 = vsub.f32 %v1133, %v1761
    %v1957 = vsub.f32 %v1134, %v1762
    %v1958 = vsub.f32 %v1135, %v1763
    %v1959 = vsel %vm1895, %v1927, 0.0
    %v1960 = vsel %vm1896, %v1928, 0.0
    %v1961 = vsel %vm1897, %v1929, 0.0
    %v1962 = vsel %vm1898, %v1930, 0.0
    %v1963 = vsel %vm1899, %v1931, 0.0
    %v1964 = vsel %vm1900, %v1932, 0.0
    %v1965 = vsel %vm1901, %v1933, 0.0
    %v1966 = vsel %vm1902, %v1934, 0.0
    %v1967 = vsel %vm1903, %v1935, 0.0
    %v1968 = vsel %vm1904, %v1936, 0.0
    %v1969 = vsel %vm1905, %v1937, 0.0
    %v1970 = vsel %vm1906, %v1938, 0.0
    %v1971 = vsel %vm1907, %v1939, 0.0
    %v1972 = vsel %vm1908, %v1940, 0.0
    %v1973 = vsel %vm1909, %v1941, 0.0
    %v1974 = vsel %vm1910, %v1942, 0.0
    %v1975 = vsel %vm1911, %v1943, 0.0
    %v1976 = vsel %vm1912, %v1944, 0.0
    %v1977 = vsel %vm1913, %v1945, 0.0
    %v1978 = vsel %vm1914, %v1946, 0.0
    %v1979 = vsel %vm1915, %v1947, 0.0
    %v1980 = vsel %vm1916, %v1948, 0.0
    %v1981 = vsel %vm1917, %v1949, 0.0
    %v1982 = vsel %vm1918, %v1950, 0.0
    %v1983 = vsel %vm1919, %v1951, 0.0
    %v1984 = vsel %vm1920, %v1952, 0.0
    %v1985 = vsel %vm1921, %v1953, 0.0
    %v1986 = vsel %vm1922, %v1954, 0.0
    %v1987 = vsel %vm1923, %v1955, 0.0
    %v1988 = vsel %vm1924, %v1956, 0.0
    %v1989 = vsel %vm1925, %v1957, 0.0
    %v1990 = vsel %vm1926, %v1958, 0.0
    %v1991 = vsel %vm351, %v1959, 0.0
    %v1992 = vsel %vm351, %v1960, 0.0
    %v1993 = vadd.f32 %v1991, %v1992
    %v1994 = vsel %vm351, %v1961, 0.0
    %v1995 = vadd.f32 %v1993, %v1994
    %v1996 = vsel %vm351, %v1962, 0.0
    %v1997 = vadd.f32 %v1995, %v1996
    %v1998 = vsel %vm351, %v1963, 0.0
    %v1999 = vadd.f32 %v1997, %v1998
    %v2000 = vsel %vm351, %v1964, 0.0
    %v2001 = vadd.f32 %v1999, %v2000
    %v2002 = vsel %vm351, %v1965, 0.0
    %v2003 = vadd.f32 %v2001, %v2002
    %v2004 = vsel %vm351, %v1966, 0.0
    %v2005 = vadd.f32 %v2003, %v2004
    %v2006 = vsel %vm351, %v1967, 0.0
    %v2007 = vadd.f32 %v2005, %v2006
    %v2008 = vsel %vm351, %v1968, 0.0
    %v2009 = vadd.f32 %v2007, %v2008
    %v2010 = vsel %vm351, %v1969, 0.0
    %v2011 = vadd.f32 %v2009, %v2010
    %v2012 = vsel %vm351, %v1970, 0.0
    %v2013 = vadd.f32 %v2011, %v2012
    %v2014 = vsel %vm351, %v1971, 0.0
    %v2015 = vadd.f32 %v2013, %v2014
    %v2016 = vsel %vm351, %v1972, 0.0
    %v2017 = vadd.f32 %v2015, %v2016
    %v2018 = vsel %vm351, %v1973, 0.0
    %v2019 = vadd.f32 %v2017, %v2018
    %v2020 = vsel %vm351, %v1974, 0.0
    %v2021 = vadd.f32 %v2019, %v2020
    %v2022 = vsel %vm351, %v1975, 0.0
    %v2023 = vadd.f32 %v2021, %v2022
    %v2024 = vsel %vm351, %v1976, 0.0
    %v2025 = vadd.f32 %v2023, %v2024
    %v2026 = vsel %vm351, %v1977, 0.0
    %v2027 = vadd.f32 %v2025, %v2026
    %v2028 = vsel %vm351, %v1978, 0.0
    %v2029 = vadd.f32 %v2027, %v2028
    %v2030 = vsel %vm351, %v1979, 0.0
    %v2031 = vadd.f32 %v2029, %v2030
    %v2032 = vsel %vm351, %v1980, 0.0
    %v2033 = vadd.f32 %v2031, %v2032
    %v2034 = vsel %vm351, %v1981, 0.0
    %v2035 = vadd.f32 %v2033, %v2034
    %v2036 = vsel %vm351, %v1982, 0.0
    %v2037 = vadd.f32 %v2035, %v2036
    %v2038 = vsel %vm351, %v1983, 0.0
    %v2039 = vadd.f32 %v2037, %v2038
    %v2040 = vsel %vm351, %v1984, 0.0
    %v2041 = vadd.f32 %v2039, %v2040
    %v2042 = vsel %vm351, %v1985, 0.0
    %v2043 = vadd.f32 %v2041, %v2042
    %v2044 = vsel %vm351, %v1986, 0.0
    %v2045 = vadd.f32 %v2043, %v2044
    %v2046 = vsel %vm351, %v1987, 0.0
    %v2047 = vadd.f32 %v2045, %v2046
    %v2048 = vsel %vm351, %v1988, 0.0
    %v2049 = vadd.f32 %v2047, %v2048
    %v2050 = vsel %vm351, %v1989, 0.0
    %v2051 = vadd.f32 %v2049, %v2050
    %v2052 = vsel %vm351, %v1990, 0.0
    %v2053 = vadd.f32 %v2051, %v2052
    %2054 = vadd.xlane.f32.xlu0 %v2053
    %v2055 = vpop.xlane.xlu0 %2054
    %v2056 = vrot.slane %v2055, 4
    %v2057 = vadd.f32 %v2055, %v2056
    %v2058 = vrot.slane %v2057, 2
    %v2059 = vadd.f32 %v2057, %v2058
    %v2060 = vrot.slane %v2059, 1
    %v2061 = vadd.f32 %v2059, %v2060
    %s2062 = vtos %v2061
    %v2063 = vstv %s2062
    %2064 = vst [vmem:[#allocation2] sm:$0xff] %v2063
    // Predicated region
    $region10: #{tpu_custom_call.1} parent=1 // pred_check
      _
    $region11: #{tpu_custom_call.1} parent=1 // pred_check_branch
      %2066 = sbr.rel (0) target = $region13
    $region12: #{tpu_custom_call.1} parent=1 // pred_region
      %s2068 = ssub.s32 128, 128
      %2069 = vsyncadd [#allocation3], %s2068
      %s2071 = sshll.u32 [#allocation2], 4
      %s2072 = int_to_ptr.vmem [resolvable:$true] %s2071
      %2074 = dma.vmem_to_hbm [thread:$0]  %s2072, 128, %s2, [#allocation3]
    $region13: #{tpu_custom_call.1} parent=1 // pred_fallthru
      _
    // Predicated region
    $region14: #{tpu_custom_call.1} parent=1 // pred_check
      _
    $region15: #{tpu_custom_call.1} parent=1 // pred_check_branch
      %2076 = sbr.rel (0) target = $region17
    $region16: #{tpu_custom_call.1} parent=1 // pred_region
      %2077 = dma.done [#allocation3], 128
    $region17: #{tpu_custom_call.1} parent=1 // pred_fallthru
      _
    %2078 = vsyncpa [#allocation3], 1

</llo_original>
